<compile_context>
chip_gen: v7x
topology: tpu7x:2x2x1
jax: 0.10.0
libtpu: 0.0.40
codegen_flags: <defaults>
</compile_context>

<pallas_src>
import jax
import jax.numpy as jnp
from jax.experimental import pallas as pl
from jax.experimental.pallas import tpu as pltpu


def _fuse_batch_into_one_grid_step() -> bool:
    """v5e/v6e have a single TensorCore -> fuse the batch into one grid step.
    v7x has 2 TCs per chip -> keep a 2-way 'parallel' grid (one batch per core).
    Falls back to the per-batch grid (safe everywhere) if detection fails."""
    try:
        kind = jax.devices()[0].device_kind.lower()
        return not ("v7" in kind or "7x" in kind)
    except Exception:
        return False


def model_forward(x, weight, bias):
    """x: (B, Cin, D, H, W) f32; weight: (Cout, Cin, 3, 3, 3); bias: (Cout,)."""
    B, Cin, D, H, W = x.shape
    Cout = weight.shape[0]
    assert weight.shape[2:] == (3, 3, 3)
    assert D % 2 == 0 and H % 2 == 0 and W % 2 == 0
    HW = H * W
    DHW = D * H * W
    K = Cin * 27
    assert DHW % 128 == 0, "per-batch spatial size must be lane-aligned"

    # emulate the PyTorch .half() casts, then bf16 for MXU-native operands.
    xb = x.astype(jnp.float16).astype(jnp.bfloat16)
    wb = weight.astype(jnp.float16).astype(jnp.bfloat16)
    bf = bias.astype(jnp.float16).astype(jnp.float32).reshape(Cout, 1)

    # --- minimal glue: pad in native NCDHW order, stack the 27 taps once.
    # patches is (B, K=81, DHW) bf16, contiguous per batch element; K order is
    # (ci, kd, kh, kw), matching a plain reshape of the weights.
    xpad = jnp.pad(xb, ((0, 0), (0, 0), (1, 1), (1, 1), (1, 1)))
    taps = [xpad[:, :, kd:kd + D, kh:kh + H, kw:kw + W]
            for kd in range(3) for kh in range(3) for kw in range(3)]
    patches = jnp.stack(taps, axis=2).reshape(B, K, DHW)           # bf16

    w_mat = wb.reshape(Cout, K)                                    # (16, 81) bf16

    # grid / block-batch policy (see _fuse_batch_into_one_grid_step)
    bb = B if _fuse_batch_into_one_grid_step() else 1
    assert B % bb == 0
    grid = (B // bb,)

    # roll shifts for the 2x2x2 pool (np.roll semantics: out[i] = in[(i-s) % n],
    # so s = DHW - off brings element i+off to lane i).
    s_w, s_h, s_d = DHW - 1, DHW - W, DHW - HW

    def kernel(a_ref, w_ref, b_ref, o_ref):
        w = w_ref[...]                                             # (Cout, K) bf16
        b = b_ref[...]                                             # (Cout, 1) f32
        for i in range(bb):                                        # static unroll
            # fused conv: one bf16 MXU matmul, f32 accumulation
            y = jnp.dot(w, a_ref[i],
                        preferred_element_type=jnp.float32)        # (Cout, DHW)
            # 2x2x2 max-pool: 3-step roll/max tree along the lane axis.
            # Wrap-around only hits odd-(d,h,w) positions (discarded later).
            m = jnp.maximum(y, pltpu.roll(y, s_w, axis=1))
            m = jnp.maximum(m, pltpu.roll(m, s_h, axis=1))
            m = jnp.maximum(m, pltpu.roll(m, s_d, axis=1))
            # bias after the max (shift-invariant), stabilized logsumexp + relu
            z = m + b                                              # (Cout, DHW)
            zmax = jnp.max(z, axis=0, keepdims=True)               # (1, DHW)
            lse = zmax + jnp.log(jnp.sum(jnp.exp(z - zmax), axis=0,
                                         keepdims=True))
            o_ref[i] = jnp.maximum(lse, 0.0)                       # (1, DHW)

    out = pl.pallas_call(
        kernel,
        out_shape=jax.ShapeDtypeStruct((B, 1, DHW), jnp.float32),
        grid_spec=pltpu.PrefetchScalarGridSpec(
            num_scalar_prefetch=0,
            grid=grid,
            in_specs=[
                pl.BlockSpec((bb, K, DHW), lambda g: (g, 0, 0)),   # patches
                pl.BlockSpec((Cout, K), lambda g: (0, 0)),         # weights (resident)
                pl.BlockSpec((Cout, 1), lambda g: (0, 0)),         # bias (resident)
            ],
            out_specs=pl.BlockSpec((bb, 1, DHW), lambda g: (g, 0, 0)),
        ),
        compiler_params=pltpu.CompilerParams(
            dimension_semantics=("parallel",)),
    )(patches, w_mat, bf)

    # valid pooled results live at even (d, h, w) positions; select them here
    # (tiny strided slice on a 16 KB array) and restore NCDHW.
    lse_full = out.reshape(B, D, H, W)
    return lse_full[:, ::2, ::2, ::2][:, None]                     # (B,1,D/2,H/2,W/2)


def _reference(x, weight, bias):
    """Plain-JAX reference of the same semantics (fp16-truncated operands)."""
    x16 = x.astype(jnp.float16).astype(jnp.float32)
    w16 = weight.astype(jnp.float16).astype(jnp.float32)
    b16 = bias.astype(jnp.float16).astype(jnp.float32)
    y = jax.lax.conv_general_dilated(
        x16, w16, window_strides=(1, 1, 1),
        padding=((1, 1), (1, 1), (1, 1)),
        dimension_numbers=("NCDHW", "OIDHW", "NCDHW"),
    ) + b16[None, :, None, None, None]
    y = jax.lax.reduce_window(y, -jnp.inf, jax.lax.max,
                              (1, 1, 2, 2, 2), (1, 1, 2, 2, 2), "VALID")
    lse = jax.nn.logsumexp(y, axis=1, keepdims=True)
    return jnp.maximum(lse, 0.0)


if __name__ == "__main__":
    in_channels, out_channels, ksize = 3, 16, 3
    B, D, H, W = 2, 8, 16, 16

    key = jax.random.PRNGKey(0)
    kx, kw, kb = jax.random.split(key, 3)

    x = jax.random.normal(kx, (B, in_channels, D, H, W), dtype=jnp.float32)
    # deterministic conv param init (uniform +/- 1/sqrt(fan_in), like PyTorch)
    fan_in = in_channels * ksize ** 3
    bound = 1.0 / (fan_in ** 0.5)
    weight = jax.random.uniform(kw, (out_channels, in_channels, ksize, ksize, ksize),
                                minval=-bound, maxval=bound, dtype=jnp.float32)
    bias = jax.random.uniform(kb, (out_channels,), minval=-bound, maxval=bound,
                              dtype=jnp.float32)

    forward = jax.jit(model_forward)
    out = jax.block_until_ready(forward(x, weight, bias))
    ref = jax.block_until_ready(_reference(x, weight, bias))

    assert out.shape == (B, 1, D // 2, H // 2, W // 2)
    assert out.dtype == jnp.float32
    max_err = float(jnp.max(jnp.abs(out - ref)))
    assert jnp.allclose(out, ref, rtol=2e-2, atol=2e-2), (
        f"mismatch vs reference (max abs err {max_err})")

    print("KERNEL_OK")
</pallas_src>

<mosaic_0001>
module attributes {stable_mosaic.version = 11 : i64} {
  func.func @kernel(%arg0: i32, %arg1: memref<2x81x2048xbf16, #tpu.memory_space<vmem>>, %arg2: memref<16x81xbf16, #tpu.memory_space<vmem>>, %arg3: memref<16x1xf32, #tpu.memory_space<vmem>>, %arg4: memref<2x1x2048xf32, #tpu.memory_space<vmem>>) attributes {dimension_semantics = [#tpu.dimension_semantics<parallel>], iteration_bounds = array<i64: 1>, scalar_prefetch = 0 : i64, scratch_operands = 0 : i64, tpu.core_type = #tpu.core_type<tc>, window_params = [{transform_indices = @transform_0, window_bounds = array<i64: 2, 81, 2048>}, {pipeline_mode = #tpu.pipeline_mode<synchronous>, transform_indices = @transform_1, window_bounds = array<i64: 16, 81>}, {pipeline_mode = #tpu.pipeline_mode<synchronous>, transform_indices = @transform_2, window_bounds = array<i64: 16, 1>}, {transform_indices = @transform_3, window_bounds = array<i64: 2, 1, 2048>}]} {
    %c0 = arith.constant 0 : index
    %c0_0 = arith.constant 0 : index
    %0 = vector.load %arg2[%c0, %c0_0] : memref<16x81xbf16, #tpu.memory_space<vmem>>, vector<16x81xbf16>
    %c0_1 = arith.constant 0 : index
    %c0_2 = arith.constant 0 : index
    %1 = vector.load %arg3[%c0_1, %c0_2] : memref<16x1xf32, #tpu.memory_space<vmem>>, vector<16x1xf32>
    %c0_3 = arith.constant 0 : index
    %c0_4 = arith.constant 0 : index
    %c0_5 = arith.constant 0 : index
    %2 = vector.load %arg1[%c0_3, %c0_4, %c0_5] : memref<2x81x2048xbf16, #tpu.memory_space<vmem>>, vector<1x81x2048xbf16>
    %3 = vector.shape_cast %2 : vector<1x81x2048xbf16> to vector<81x2048xbf16>
    %cst = arith.constant dense<0.000000e+00> : vector<16x2048xf32>
    %4 = tpu.matmul %0, %3, %cst {dimension_numbers = #tpu.dot_dimension_numbers<[1], [0], [0], [1], [0, 0, 1, 1], [], []>} : vector<16x81xbf16>, vector<81x2048xbf16>, vector<16x2048xf32> -> vector<16x2048xf32>
    %c2047_i32 = arith.constant 2047 : i32
    %5 = tpu.dynamic_rotate %4 by %c2047_i32 dim 1 : vector<16x2048xf32>, i32 -> vector<16x2048xf32>
    %6 = arith.maximumf %4, %5 : vector<16x2048xf32>
    %c2032_i32 = arith.constant 2032 : i32
    %7 = tpu.dynamic_rotate %6 by %c2032_i32 dim 1 : vector<16x2048xf32>, i32 -> vector<16x2048xf32>
    %8 = arith.maximumf %6, %7 : vector<16x2048xf32>
    %c1792_i32 = arith.constant 1792 : i32
    %9 = tpu.dynamic_rotate %8 by %c1792_i32 dim 1 : vector<16x2048xf32>, i32 -> vector<16x2048xf32>
    %10 = arith.maximumf %8, %9 : vector<16x2048xf32>
    %11 = vector.broadcast %1 : vector<16x1xf32> to vector<16x2048xf32>
    %12 = arith.addf %10, %11 : vector<16x2048xf32>
    %cst_6 = arith.constant dense<0xFF800000> : vector<2048xf32>
    %13 = vector.multi_reduction <maximumf>, %12, %cst_6 [0] : vector<16x2048xf32> to vector<2048xf32>
    %14 = vector.shape_cast %13 : vector<2048xf32> to vector<1x2048xf32>
    %15 = vector.broadcast %14 : vector<1x2048xf32> to vector<16x2048xf32>
    %16 = arith.subf %12, %15 : vector<16x2048xf32>
    %17 = math.exp %16 : vector<16x2048xf32>
    %cst_7 = arith.constant dense<0.000000e+00> : vector<2048xf32>
    %18 = vector.multi_reduction <add>, %17, %cst_7 [0] : vector<16x2048xf32> to vector<2048xf32>
    %19 = vector.shape_cast %18 : vector<2048xf32> to vector<1x2048xf32>
    %20 = math.log %19 : vector<1x2048xf32>
    %21 = arith.addf %14, %20 : vector<1x2048xf32>
    %cst_8 = arith.constant 0.000000e+00 : f32
    %22 = vector.broadcast %cst_8 : f32 to vector<1x2048xf32>
    %23 = arith.maximumf %21, %22 : vector<1x2048xf32>
    %c0_9 = arith.constant 0 : index
    %c0_10 = arith.constant 0 : index
    %c0_11 = arith.constant 0 : index
    %24 = vector.load %arg4[%c0_9, %c0_10, %c0_11] : memref<2x1x2048xf32, #tpu.memory_space<vmem>>, vector<1x1x2048xf32>
    %25 = vector.shape_cast %24 : vector<1x1x2048xf32> to vector<1x2048xf32>
    %26 = vector.shape_cast %23 : vector<1x2048xf32> to vector<1x1x2048xf32>
    tpu.vector_store %arg4[%c0_9, %c0_10, %c0_11], %26 {strides = array<i32>} : memref<2x1x2048xf32, #tpu.memory_space<vmem>>, vector<1x1x2048xf32>,
    %c1 = arith.constant 1 : index
    %c0_12 = arith.constant 0 : index
    %c0_13 = arith.constant 0 : index
    %27 = vector.load %arg1[%c1, %c0_12, %c0_13] : memref<2x81x2048xbf16, #tpu.memory_space<vmem>>, vector<1x81x2048xbf16>
    %28 = vector.shape_cast %27 : vector<1x81x2048xbf16> to vector<81x2048xbf16>
    %cst_14 = arith.constant dense<0.000000e+00> : vector<16x2048xf32>
    %29 = tpu.matmul %0, %28, %cst_14 {dimension_numbers = #tpu.dot_dimension_numbers<[1], [0], [0], [1], [0, 0, 1, 1], [], []>} : vector<16x81xbf16>, vector<81x2048xbf16>, vector<16x2048xf32> -> vector<16x2048xf32>
    %c2047_i32_15 = arith.constant 2047 : i32
    %30 = tpu.dynamic_rotate %29 by %c2047_i32_15 dim 1 : vector<16x2048xf32>, i32 -> vector<16x2048xf32>
    %31 = arith.maximumf %29, %30 : vector<16x2048xf32>
    %c2032_i32_16 = arith.constant 2032 : i32
    %32 = tpu.dynamic_rotate %31 by %c2032_i32_16 dim 1 : vector<16x2048xf32>, i32 -> vector<16x2048xf32>
    %33 = arith.maximumf %31, %32 : vector<16x2048xf32>
    %c1792_i32_17 = arith.constant 1792 : i32
    %34 = tpu.dynamic_rotate %33 by %c1792_i32_17 dim 1 : vector<16x2048xf32>, i32 -> vector<16x2048xf32>
    %35 = arith.maximumf %33, %34 : vector<16x2048xf32>
    %36 = vector.broadcast %1 : vector<16x1xf32> to vector<16x2048xf32>
    %37 = arith.addf %35, %36 : vector<16x2048xf32>
    %cst_18 = arith.constant dense<0xFF800000> : vector<2048xf32>
    %38 = vector.multi_reduction <maximumf>, %37, %cst_18 [0] : vector<16x2048xf32> to vector<2048xf32>
    %39 = vector.shape_cast %38 : vector<2048xf32> to vector<1x2048xf32>
    %40 = vector.broadcast %39 : vector<1x2048xf32> to vector<16x2048xf32>
    %41 = arith.subf %37, %40 : vector<16x2048xf32>
    %42 = math.exp %41 : vector<16x2048xf32>
    %cst_19 = arith.constant dense<0.000000e+00> : vector<2048xf32>
    %43 = vector.multi_reduction <add>, %42, %cst_19 [0] : vector<16x2048xf32> to vector<2048xf32>
    %44 = vector.shape_cast %43 : vector<2048xf32> to vector<1x2048xf32>
    %45 = math.log %44 : vector<1x2048xf32>
    %46 = arith.addf %39, %45 : vector<1x2048xf32>
    %cst_20 = arith.constant 0.000000e+00 : f32
    %47 = vector.broadcast %cst_20 : f32 to vector<1x2048xf32>
    %48 = arith.maximumf %46, %47 : vector<1x2048xf32>
    %c1_21 = arith.constant 1 : index
    %c0_22 = arith.constant 0 : index
    %c0_23 = arith.constant 0 : index
    %49 = vector.load %arg4[%c1_21, %c0_22, %c0_23] : memref<2x1x2048xf32, #tpu.memory_space<vmem>>, vector<1x1x2048xf32>
    %50 = vector.shape_cast %49 : vector<1x1x2048xf32> to vector<1x2048xf32>
    %51 = vector.shape_cast %48 : vector<1x2048xf32> to vector<1x1x2048xf32>
    tpu.vector_store %arg4[%c1_21, %c0_22, %c0_23], %51 {strides = array<i32>} : memref<2x1x2048xf32, #tpu.memory_space<vmem>>, vector<1x1x2048xf32>,
    return
  }
  func.func @transform_0(%arg0: i32) -> (i32, i32, i32) {
    %c0_i32 = arith.constant 0 : i32
    %c0_i32_0 = arith.constant 0 : i32
    %c0_i32_1 = arith.constant 0 : i32
    return %arg0, %c0_i32, %c0_i32_0 : i32, i32, i32
  }
  func.func @transform_1(%arg0: i32) -> (i32, i32) {
    %c0_i32 = arith.constant 0 : i32
    %c0_i32_0 = arith.constant 0 : i32
    %c0_i32_1 = arith.constant 0 : i32
    return %c0_i32, %c0_i32_0 : i32, i32
  }
  func.func @transform_2(%arg0: i32) -> (i32, i32) {
    %c0_i32 = arith.constant 0 : i32
    %c0_i32_0 = arith.constant 0 : i32
    %c0_i32_1 = arith.constant 0 : i32
    return %c0_i32, %c0_i32_0 : i32, i32
  }
  func.func @transform_3(%arg0: i32) -> (i32, i32, i32) {
    %c0_i32 = arith.constant 0 : i32
    %c0_i32_0 = arith.constant 0 : i32
    %c0_i32_1 = arith.constant 0 : i32
    return %arg0, %c0_i32, %c0_i32_0 : i32, i32, i32
  }
}

</mosaic_0001>

<llo_original>
// kernel: model_forward.1
$region0: #{model_forward.1}
  #allocation0 [shape = 'u32[]', space=smem, size = 0x4, offset = 0x4, fixed_abs, tag = 'smem constant byte address 0x4 - core index']
  #allocation1 [shape = 'u32[144,128]{1,0:T(1,128)}', space=vmem, size = 0x12000, scoped, tag = 'internal scratch']
  %s0 = inlined_call_operand.vmem [shape: bf16[2,81,2048], index: 0, kind: input, shape index: {}]
  %s1 = inlined_call_operand.vmem [shape: bf16[16,81], index: 1, kind: input, shape index: {}]
  %s2 = inlined_call_operand.vmem [shape: f32[16,1], index: 2, kind: input, shape index: {}]
  %s3 = inlined_call_operand.vmem [shape: f32[2,1,2048], index: 3, kind: output, shape index: {}]
  %s4 = sld [smem:[#allocation0]]
  $region22: #{model_forward.1} parent=0
    _
  %s6 = ssub.s32 1, %s4
  %s7 = scalar_select 0, %s6, %s4
  // Predicated region
  $region2: #{model_forward.1} parent=0 // pred_check
    _
  $region3: #{model_forward.1} parent=0 // pred_check_branch
    %9 = sbr.rel (0) target = $region5
  $region4: #{model_forward.1} parent=0 // pred_region
    _
  $region5: #{model_forward.1} parent=0 // pred_fallthru
    _
  // Predicated region
  $region6: #{model_forward.1} parent=0 // pred_check
    _
  $region7: #{model_forward.1} parent=0 // pred_check_branch
    %11 = sbr.rel (0) target = $region9
  $region8: #{model_forward.1} parent=0 // pred_region
    _
  $region9: #{model_forward.1} parent=0 // pred_fallthru
    _
  // Predicated region
  $region10: #{model_forward.1} parent=0 // pred_check
    _
  $region11: #{model_forward.1} parent=0 // pred_check_branch
    %13 = sbr.rel (0) target = $region13
  $region12: #{model_forward.1} parent=0 // pred_region
    _
  $region13: #{model_forward.1} parent=0 // pred_fallthru
    _
  %v15 = vld [vmem:[%s1] sm:$0xf]
  %v16 = vld [vmem:[%s1 + $0x4] sm:$0xf]
  %v17 = vld [vmem:[%s2] sm:$0xff]
  %v18 = vld [vmem:[%s2 + $0x8] sm:$0xff]
  %v19 = vld [vmem:[%s0] sm:$0xff]
  %v20 = vld [vmem:[%s0 + $0x8] sm:$0xff]
  %v21 = vld [vmem:[%s0 + $0x10] sm:$0xff]
  %v22 = vld [vmem:[%s0 + $0x18] sm:$0xff]
  %v23 = vld [vmem:[%s0 + $0x20] sm:$0xff]
  %v24 = vld [vmem:[%s0 + $0x28] sm:$0xff]
  %v25 = vld [vmem:[%s0 + $0x30] sm:$0xff]
  %v26 = vld [vmem:[%s0 + $0x38] sm:$0xff]
  %v27 = vld [vmem:[%s0 + $0x40] sm:$0xff]
  %v28 = vld [vmem:[%s0 + $0x48] sm:$0xff]
  %v29 = vld [vmem:[%s0 + $0x50] sm:$0xff]
  %v30 = vld [vmem:[%s0 + $0x58] sm:$0xff]
  %v31 = vld [vmem:[%s0 + $0x60] sm:$0xff]
  %v32 = vld [vmem:[%s0 + $0x68] sm:$0xff]
  %v33 = vld [vmem:[%s0 + $0x70] sm:$0xff]
  %v34 = vld [vmem:[%s0 + $0x78] sm:$0xff]
  %v35 = vld [vmem:[%s0 + $0x80] sm:$0xff]
  %v36 = vld [vmem:[%s0 + $0x88] sm:$0xff]
  %v37 = vld [vmem:[%s0 + $0x90] sm:$0xff]
  %v38 = vld [vmem:[%s0 + $0x98] sm:$0xff]
  %v39 = vld [vmem:[%s0 + $0xa0] sm:$0xff]
  %v40 = vld [vmem:[%s0 + $0xa8] sm:$0xff]
  %v41 = vld [vmem:[%s0 + $0xb0] sm:$0xff]
  %v42 = vld [vmem:[%s0 + $0xb8] sm:$0xff]
  %v43 = vld [vmem:[%s0 + $0xc0] sm:$0xff]
  %v44 = vld [vmem:[%s0 + $0xc8] sm:$0xff]
  %v45 = vld [vmem:[%s0 + $0xd0] sm:$0xff]
  %v46 = vld [vmem:[%s0 + $0xd8] sm:$0xff]
  %v47 = vld [vmem:[%s0 + $0xe0] sm:$0xff]
  %v48 = vld [vmem:[%s0 + $0xe8] sm:$0xff]
  %v49 = vld [vmem:[%s0 + $0xf0] sm:$0xff]
  %v50 = vld [vmem:[%s0 + $0xf8] sm:$0xff]
  %v51 = vld [vmem:[%s0 + $0x100] sm:$0xff]
  %v52 = vld [vmem:[%s0 + $0x108] sm:$0xff]
  %v53 = vld [vmem:[%s0 + $0x110] sm:$0xff]
  %v54 = vld [vmem:[%s0 + $0x118] sm:$0xff]
  %v55 = vld [vmem:[%s0 + $0x120] sm:$0xff]
  %v56 = vld [vmem:[%s0 + $0x128] sm:$0xff]
  %v57 = vld [vmem:[%s0 + $0x130] sm:$0xff]
  %v58 = vld [vmem:[%s0 + $0x138] sm:$0xff]
  %v59 = vld [vmem:[%s0 + $0x140] sm:$0xff]
  %v60 = vld [vmem:[%s0 + $0x148] sm:$0xff]
  %v61 = vld [vmem:[%s0 + $0x150] sm:$0xff]
  %v62 = vld [vmem:[%s0 + $0x158] sm:$0xff]
  %v63 = vld [vmem:[%s0 + $0x160] sm:$0xff]
  %v64 = vld [vmem:[%s0 + $0x168] sm:$0xff]
  %v65 = vld [vmem:[%s0 + $0x170] sm:$0xff]
  %v66 = vld [vmem:[%s0 + $0x178] sm:$0xff]
  %v67 = vld [vmem:[%s0 + $0x180] sm:$0xff]
  %v68 = vld [vmem:[%s0 + $0x188] sm:$0xff]
  %v69 = vld [vmem:[%s0 + $0x190] sm:$0xff]
  %v70 = vld [vmem:[%s0 + $0x198] sm:$0xff]
  %v71 = vld [vmem:[%s0 + $0x1a0] sm:$0xff]
  %v72 = vld [vmem:[%s0 + $0x1a8] sm:$0xff]
  %v73 = vld [vmem:[%s0 + $0x1b0] sm:$0xff]
  %v74 = vld [vmem:[%s0 + $0x1b8] sm:$0xff]
  %v75 = vld [vmem:[%s0 + $0x1c0] sm:$0xff]
  %v76 = vld [vmem:[%s0 + $0x1c8] sm:$0xff]
  %v77 = vld [vmem:[%s0 + $0x1d0] sm:$0xff]
  %v78 = vld [vmem:[%s0 + $0x1d8] sm:$0xff]
  %v79 = vld [vmem:[%s0 + $0x1e0] sm:$0xff]
  %v80 = vld [vmem:[%s0 + $0x1e8] sm:$0xff]
  %v81 = vld [vmem:[%s0 + $0x1f0] sm:$0xff]
  %v82 = vld [vmem:[%s0 + $0x1f8] sm:$0xff]
  %v83 = vld [vmem:[%s0 + $0x200] sm:$0xff]
  %v84 = vld [vmem:[%s0 + $0x208] sm:$0xff]
  %v85 = vld [vmem:[%s0 + $0x210] sm:$0xff]
  %v86 = vld [vmem:[%s0 + $0x218] sm:$0xff]
  %v87 = vld [vmem:[%s0 + $0x220] sm:$0xff]
  %v88 = vld [vmem:[%s0 + $0x228] sm:$0xff]
  %v89 = vld [vmem:[%s0 + $0x230] sm:$0xff]
  %v90 = vld [vmem:[%s0 + $0x238] sm:$0xff]
  %v91 = vld [vmem:[%s0 + $0x240] sm:$0xff]
  %v92 = vld [vmem:[%s0 + $0x248] sm:$0xff]
  %v93 = vld [vmem:[%s0 + $0x250] sm:$0xff]
  %v94 = vld [vmem:[%s0 + $0x258] sm:$0xff]
  %v95 = vld [vmem:[%s0 + $0x260] sm:$0xff]
  %v96 = vld [vmem:[%s0 + $0x268] sm:$0xff]
  %v97 = vld [vmem:[%s0 + $0x270] sm:$0xff]
  %v98 = vld [vmem:[%s0 + $0x278] sm:$0xff]
  %v99 = vld [vmem:[%s0 + $0x280] sm:$0x11]
  %v100 = vld [vmem:[%s0 + $0x288] sm:$0x11]
  %v101 = vld [vmem:[%s0 + $0x290] sm:$0x11]
  %v102 = vld [vmem:[%s0 + $0x298] sm:$0x11]
  %v103 = vld [vmem:[%s0 + $0x2a0] sm:$0x11]
  %v104 = vld [vmem:[%s0 + $0x2a8] sm:$0x11]
  %v105 = vld [vmem:[%s0 + $0x2b0] sm:$0x11]
  %v106 = vld [vmem:[%s0 + $0x2b8] sm:$0x11]
  %v109 = vunpack.c.l.b16 %v15
  %v110 = vunpack.c.l.b16 %v16
  %v111 = vpack.c.b16 %v110, %v109
  %v200 = vunpack.c.l.b16 %v19
  %v201 = vunpack.c.h.b16 %v19
  %v202 = vunpack.c.l.b16 %v20
  %v203 = vunpack.c.h.b16 %v20
  %v204 = vunpack.c.l.b16 %v21
  %v205 = vunpack.c.h.b16 %v21
  %v206 = vunpack.c.l.b16 %v22
  %v207 = vunpack.c.h.b16 %v22
  %v208 = vunpack.c.l.b16 %v23
  %v209 = vunpack.c.h.b16 %v23
  %v210 = vunpack.c.l.b16 %v24
  %v211 = vunpack.c.h.b16 %v24
  %v212 = vunpack.c.l.b16 %v25
  %v213 = vunpack.c.h.b16 %v25
  %v214 = vunpack.c.l.b16 %v26
  %v215 = vunpack.c.h.b16 %v26
  %v216 = vunpack.c.l.b16 %v27
  %v217 = vunpack.c.h.b16 %v27
  %v218 = vunpack.c.l.b16 %v28
  %v219 = vunpack.c.h.b16 %v28
  %v220 = vunpack.c.l.b16 %v29
  %v221 = vunpack.c.h.b16 %v29
  %v222 = vunpack.c.l.b16 %v30
  %v223 = vunpack.c.h.b16 %v30
  %v224 = vunpack.c.l.b16 %v31
  %v225 = vunpack.c.h.b16 %v31
  %v226 = vunpack.c.l.b16 %v32
  %v227 = vunpack.c.h.b16 %v32
  %v228 = vunpack.c.l.b16 %v33
  %v229 = vunpack.c.h.b16 %v33
  %v230 = vunpack.c.l.b16 %v34
  %v231 = vunpack.c.h.b16 %v34
  %v232 = vunpack.c.l.b16 %v35
  %v233 = vunpack.c.h.b16 %v35
  %v234 = vunpack.c.l.b16 %v36
  %v235 = vunpack.c.h.b16 %v36
  %v236 = vunpack.c.l.b16 %v37
  %v237 = vunpack.c.h.b16 %v37
  %v238 = vunpack.c.l.b16 %v38
  %v239 = vunpack.c.h.b16 %v38
  %v240 = vunpack.c.l.b16 %v39
  %v241 = vunpack.c.h.b16 %v39
  %v242 = vunpack.c.l.b16 %v40
  %v243 = vunpack.c.h.b16 %v40
  %v244 = vunpack.c.l.b16 %v41
  %v245 = vunpack.c.h.b16 %v41
  %v246 = vunpack.c.l.b16 %v42
  %v247 = vunpack.c.h.b16 %v42
  %v248 = vunpack.c.l.b16 %v43
  %v249 = vunpack.c.h.b16 %v43
  %v250 = vunpack.c.l.b16 %v44
  %v251 = vunpack.c.h.b16 %v44
  %v252 = vunpack.c.l.b16 %v45
  %v253 = vunpack.c.h.b16 %v45
  %v254 = vunpack.c.l.b16 %v46
  %v255 = vunpack.c.h.b16 %v46
  %v256 = vunpack.c.l.b16 %v47
  %v257 = vunpack.c.h.b16 %v47
  %v258 = vunpack.c.l.b16 %v48
  %v259 = vunpack.c.h.b16 %v48
  %v260 = vunpack.c.l.b16 %v49
  %v261 = vunpack.c.h.b16 %v49
  %v262 = vunpack.c.l.b16 %v50
  %v263 = vunpack.c.h.b16 %v50
  %v264 = vunpack.c.l.b16 %v51
  %v265 = vunpack.c.h.b16 %v51
  %v266 = vunpack.c.l.b16 %v52
  %v267 = vunpack.c.h.b16 %v52
  %v268 = vunpack.c.l.b16 %v53
  %v269 = vunpack.c.h.b16 %v53
  %v270 = vunpack.c.l.b16 %v54
  %v271 = vunpack.c.h.b16 %v54
  %v272 = vunpack.c.l.b16 %v55
  %v273 = vunpack.c.h.b16 %v55
  %v274 = vunpack.c.l.b16 %v56
  %v275 = vunpack.c.h.b16 %v56
  %v276 = vunpack.c.l.b16 %v57
  %v277 = vunpack.c.h.b16 %v57
  %v278 = vunpack.c.l.b16 %v58
  %v279 = vunpack.c.h.b16 %v58
  %v280 = vunpack.c.l.b16 %v59
  %v281 = vunpack.c.h.b16 %v59
  %v282 = vunpack.c.l.b16 %v60
  %v283 = vunpack.c.h.b16 %v60
  %v284 = vunpack.c.l.b16 %v61
  %v285 = vunpack.c.h.b16 %v61
  %v286 = vunpack.c.l.b16 %v62
  %v287 = vunpack.c.h.b16 %v62
  %v288 = vunpack.c.l.b16 %v63
  %v289 = vunpack.c.h.b16 %v63
  %v290 = vunpack.c.l.b16 %v64
  %v291 = vunpack.c.h.b16 %v64
  %v292 = vunpack.c.l.b16 %v65
  %v293 = vunpack.c.h.b16 %v65
  %v294 = vunpack.c.l.b16 %v66
  %v295 = vunpack.c.h.b16 %v66
  %v296 = vunpack.c.l.b16 %v67
  %v297 = vunpack.c.h.b16 %v67
  %v298 = vunpack.c.l.b16 %v68
  %v299 = vunpack.c.h.b16 %v68
  %v300 = vunpack.c.l.b16 %v69
  %v301 = vunpack.c.h.b16 %v69
  %v302 = vunpack.c.l.b16 %v70
  %v303 = vunpack.c.h.b16 %v70
  %v304 = vunpack.c.l.b16 %v71
  %v305 = vunpack.c.h.b16 %v71
  %v306 = vunpack.c.l.b16 %v72
  %v307 = vunpack.c.h.b16 %v72
  %v308 = vunpack.c.l.b16 %v73
  %v309 = vunpack.c.h.b16 %v73
  %v310 = vunpack.c.l.b16 %v74
  %v311 = vunpack.c.h.b16 %v74
  %v312 = vunpack.c.l.b16 %v75
  %v313 = vunpack.c.h.b16 %v75
  %v314 = vunpack.c.l.b16 %v76
  %v315 = vunpack.c.h.b16 %v76
  %v316 = vunpack.c.l.b16 %v77
  %v317 = vunpack.c.h.b16 %v77
  %v318 = vunpack.c.l.b16 %v78
  %v319 = vunpack.c.h.b16 %v78
  %v320 = vunpack.c.l.b16 %v79
  %v321 = vunpack.c.h.b16 %v79
  %v322 = vunpack.c.l.b16 %v80
  %v323 = vunpack.c.h.b16 %v80
  %v324 = vunpack.c.l.b16 %v81
  %v325 = vunpack.c.h.b16 %v81
  %v326 = vunpack.c.l.b16 %v82
  %v327 = vunpack.c.h.b16 %v82
  %v328 = vunpack.c.l.b16 %v83
  %v329 = vunpack.c.h.b16 %v83
  %v330 = vunpack.c.l.b16 %v84
  %v331 = vunpack.c.h.b16 %v84
  %v332 = vunpack.c.l.b16 %v85
  %v333 = vunpack.c.h.b16 %v85
  %v334 = vunpack.c.l.b16 %v86
  %v335 = vunpack.c.h.b16 %v86
  %v336 = vunpack.c.l.b16 %v87
  %v337 = vunpack.c.h.b16 %v87
  %v338 = vunpack.c.l.b16 %v88
  %v339 = vunpack.c.h.b16 %v88
  %v340 = vunpack.c.l.b16 %v89
  %v341 = vunpack.c.h.b16 %v89
  %v342 = vunpack.c.l.b16 %v90
  %v343 = vunpack.c.h.b16 %v90
  %v344 = vunpack.c.l.b16 %v91
  %v345 = vunpack.c.h.b16 %v91
  %v346 = vunpack.c.l.b16 %v92
  %v347 = vunpack.c.h.b16 %v92
  %v348 = vunpack.c.l.b16 %v93
  %v349 = vunpack.c.h.b16 %v93
  %v350 = vunpack.c.l.b16 %v94
  %v351 = vunpack.c.h.b16 %v94
  %v352 = vunpack.c.l.b16 %v95
  %v353 = vunpack.c.h.b16 %v95
  %v354 = vunpack.c.l.b16 %v96
  %v355 = vunpack.c.h.b16 %v96
  %v356 = vunpack.c.l.b16 %v97
  %v357 = vunpack.c.h.b16 %v97
  %v358 = vunpack.c.l.b16 %v98
  %v359 = vunpack.c.h.b16 %v98
  %v360 = vunpack.c.l.b16 %v99
  %v361 = vunpack.c.h.b16 %v99
  %v362 = vunpack.c.l.b16 %v100
  %v363 = vunpack.c.h.b16 %v100
  %v364 = vunpack.c.l.b16 %v101
  %v365 = vunpack.c.h.b16 %v101
  %v366 = vunpack.c.l.b16 %v102
  %v367 = vunpack.c.h.b16 %v102
  %v368 = vunpack.c.l.b16 %v103
  %v369 = vunpack.c.h.b16 %v103
  %v370 = vunpack.c.l.b16 %v104
  %v371 = vunpack.c.h.b16 %v104
  %v372 = vunpack.c.l.b16 %v105
  %v373 = vunpack.c.h.b16 %v105
  %v374 = vunpack.c.l.b16 %v106
  %v375 = vunpack.c.h.b16 %v106
  %v376 = vpack.c.b16 %v216, %v200
  %v377 = vpack.c.b16 %v217, %v201
  %v378 = vpack.c.b16 %v218, %v202
  %v379 = vpack.c.b16 %v219, %v203
  %v380 = vpack.c.b16 %v220, %v204
  %v381 = vpack.c.b16 %v221, %v205
  %v382 = vpack.c.b16 %v222, %v206
  %v383 = vpack.c.b16 %v223, %v207
  %v384 = vpack.c.b16 %v224, %v208
  %v385 = vpack.c.b16 %v225, %v209
  %v386 = vpack.c.b16 %v226, %v210
  %v387 = vpack.c.b16 %v227, %v211
  %v388 = vpack.c.b16 %v228, %v212
  %v389 = vpack.c.b16 %v229, %v213
  %v390 = vpack.c.b16 %v230, %v214
  %v391 = vpack.c.b16 %v231, %v215
  %v392 = vpack.c.b16 %v248, %v232
  %v393 = vpack.c.b16 %v249, %v233
  %v394 = vpack.c.b16 %v250, %v234
  %v395 = vpack.c.b16 %v251, %v235
  %v396 = vpack.c.b16 %v252, %v236
  %v397 = vpack.c.b16 %v253, %v237
  %v398 = vpack.c.b16 %v254, %v238
  %v399 = vpack.c.b16 %v255, %v239
  %v400 = vpack.c.b16 %v256, %v240
  %v401 = vpack.c.b16 %v257, %v241
  %v402 = vpack.c.b16 %v258, %v242
  %v403 = vpack.c.b16 %v259, %v243
  %v404 = vpack.c.b16 %v260, %v244
  %v405 = vpack.c.b16 %v261, %v245
  %v406 = vpack.c.b16 %v262, %v246
  %v407 = vpack.c.b16 %v263, %v247
  %v408 = vpack.c.b16 %v280, %v264
  %v409 = vpack.c.b16 %v281, %v265
  %v410 = vpack.c.b16 %v282, %v266
  %v411 = vpack.c.b16 %v283, %v267
  %v412 = vpack.c.b16 %v284, %v268
  %v413 = vpack.c.b16 %v285, %v269
  %v414 = vpack.c.b16 %v286, %v270
  %v415 = vpack.c.b16 %v287, %v271
  %v416 = vpack.c.b16 %v288, %v272
  %v417 = vpack.c.b16 %v289, %v273
  %v418 = vpack.c.b16 %v290, %v274
  %v419 = vpack.c.b16 %v291, %v275
  %v420 = vpack.c.b16 %v292, %v276
  %v421 = vpack.c.b16 %v293, %v277
  %v422 = vpack.c.b16 %v294, %v278
  %v423 = vpack.c.b16 %v295, %v279
  %v424 = vpack.c.b16 %v312, %v296
  %v425 = vpack.c.b16 %v313, %v297
  %v426 = vpack.c.b16 %v314, %v298
  %v427 = vpack.c.b16 %v315, %v299
  %v428 = vpack.c.b16 %v316, %v300
  %v429 = vpack.c.b16 %v317, %v301
  %v430 = vpack.c.b16 %v318, %v302
  %v431 = vpack.c.b16 %v319, %v303
  %v432 = vpack.c.b16 %v320, %v304
  %v433 = vpack.c.b16 %v321, %v305
  %v434 = vpack.c.b16 %v322, %v306
  %v435 = vpack.c.b16 %v323, %v307
  %v436 = vpack.c.b16 %v324, %v308
  %v437 = vpack.c.b16 %v325, %v309
  %v438 = vpack.c.b16 %v326, %v310
  %v439 = vpack.c.b16 %v327, %v311
  %v440 = vpack.c.b16 %v344, %v328
  %v441 = vpack.c.b16 %v345, %v329
  %v442 = vpack.c.b16 %v346, %v330
  %v443 = vpack.c.b16 %v347, %v331
  %v444 = vpack.c.b16 %v348, %v332
  %v445 = vpack.c.b16 %v349, %v333
  %v446 = vpack.c.b16 %v350, %v334
  %v447 = vpack.c.b16 %v351, %v335
  %v448 = vpack.c.b16 %v352, %v336
  %v449 = vpack.c.b16 %v353, %v337
  %v450 = vpack.c.b16 %v354, %v338
  %v451 = vpack.c.b16 %v355, %v339
  %v452 = vpack.c.b16 %v356, %v340
  %v453 = vpack.c.b16 %v357, %v341
  %v454 = vpack.c.b16 %v358, %v342
  %v455 = vpack.c.b16 %v359, %v343
  %v456 = vpack.c.b16 %v360, %v360
  %v457 = vpack.c.b16 %v361, %v361
  %v458 = vpack.c.b16 %v362, %v362
  %v459 = vpack.c.b16 %v363, %v363
  %v460 = vpack.c.b16 %v364, %v364
  %v461 = vpack.c.b16 %v365, %v365
  %v462 = vpack.c.b16 %v366, %v366
  %v463 = vpack.c.b16 %v367, %v367
  %v464 = vpack.c.b16 %v368, %v368
  %v465 = vpack.c.b16 %v369, %v369
  %v466 = vpack.c.b16 %v370, %v370
  %v467 = vpack.c.b16 %v371, %v371
  %v468 = vpack.c.b16 %v372, %v372
  %v469 = vpack.c.b16 %v373, %v373
  %v470 = vpack.c.b16 %v374, %v374
  %v471 = vpack.c.b16 %v375, %v375
  %vm552 = vcmask 662528
  %v554 = vsel %vm552, %v111, 0
  %vm556 = vcmask 1040384
  %v557 = vsel 0, 4294967295, 65535
  %v558 = vsel %vm556, %v557, 0
  %v560 = vand.u32 %v456, %v558
  %v563 = vand.u32 %v457, %v558
  %v566 = vand.u32 %v458, %v558
  %v569 = vand.u32 %v459, %v558
  %v572 = vand.u32 %v460, %v558
  %v575 = vand.u32 %v461, %v558
  %v578 = vand.u32 %v462, %v558
  %v581 = vand.u32 %v463, %v558
  %v584 = vand.u32 %v464, %v558
  %v587 = vand.u32 %v465, %v558
  %v590 = vand.u32 %v466, %v558
  %v593 = vand.u32 %v467, %v558
  %v596 = vand.u32 %v468, %v558
  %v599 = vand.u32 %v469, %v558
  %v602 = vand.u32 %v470, %v558
  %v605 = vand.u32 %v471, %v558
  %607 = vmatprep.subr.bf16.mxu0 %v377
  %608 = vmatpush1.bf16.msra.mxu0 %v376
  %609 = vmatprep.subr.bf16.mxu0 %v393
  %610 = vmatpush1.bf16.msra.mxu0 %v392
  %611 = vmatprep.subr.bf16.mxu0 %v409
  %612 = vmatpush1.bf16.msra.mxu0 %v408
  %613 = vmatprep.subr.bf16.mxu0 %v425
  %614 = vmatpush1.bf16.msra.mxu0 %v424
  %615 = vmatprep.subr.bf16.mxu0 %v441
  %616 = vmatpush1.bf16.msra.mxu0 %v440
  %617 = vmatprep.subr.bf16.mxu0 %v563
  %618 = vmatpush1.bf16.msra.mxu0 %v560
  %619 = vmatprep.subr.bf16.mxu0 0
  %620 = vmatpush1.bf16.msra.mxu0 0
  %621 = vmatprep.subr.bf16.mxu0 0
  %622 = vmatpush1.bf16.msra.mxu0 0
  %623 = vmatprep.subr.bf16.mxu0 0
  %624 = vmatpush1.bf16.msra.mxu0 0
  %625 = vmatprep.subr.bf16.mxu0 0
  %626 = vmatpush1.bf16.msra.mxu0 0
  %627 = vmatprep.subr.bf16.mxu0 0
  %628 = vmatpush1.bf16.msra.mxu0 0
  %629 = vmatprep.subr.bf16.mxu0 0
  %630 = vmatpush1.bf16.msra.mxu0 0
  %631 = vmatprep.subr.bf16.mxu0 0
  %632 = vmatpush1.bf16.msra.mxu0 0
  %633 = vmatprep.subr.bf16.mxu0 0
  %634 = vmatpush1.bf16.msra.mxu0 0
  %635 = vmatprep.subr.bf16.mxu0 0
  %636 = vmatpush1.bf16.msra.mxu0 0
  %637 = vmatprep.subr.bf16.mxu0 0
  %638 = vmatpush1.bf16.msra.mxu0 0
  %639 = vmatprep.mubr.bf16.mxu0 0
  %640 = vmatmul.mubr.bf16.gmra.mrb[0].mxu0 %v554
  %v641 = vpop.f32.mrb[0].mxu0
  %v642 = vadd.f32 0.0, %v641
  %v643 = vpop.f32.mrb[0].mxu0
  %v644 = vadd.f32 0.0, %v643
  %v645 = vpop.f32.mrb[0].mxu0
  %v646 = vadd.f32 0.0, %v645
  %v647 = vpop.f32.mrb[0].mxu0
  %v648 = vadd.f32 0.0, %v647
  %649 = vdwg.mxu0
  %650 = vmatprep.subr.bf16.mxu0 %v379
  %651 = vmatpush1.bf16.msra.mxu0 %v378
  %652 = vmatprep.subr.bf16.mxu0 %v395
  %653 = vmatpush1.bf16.msra.mxu0 %v394
  %654 = vmatprep.subr.bf16.mxu0 %v411
  %655 = vmatpush1.bf16.msra.mxu0 %v410
  %656 = vmatprep.subr.bf16.mxu0 %v427
  %657 = vmatpush1.bf16.msra.mxu0 %v426
  %658 = vmatprep.subr.bf16.mxu0 %v443
  %659 = vmatpush1.bf16.msra.mxu0 %v442
  %660 = vmatprep.subr.bf16.mxu0 %v569
  %661 = vmatpush1.bf16.msra.mxu0 %v566
  %662 = vmatprep.subr.bf16.mxu0 0
  %663 = vmatpush1.bf16.msra.mxu0 0
  %664 = vmatprep.subr.bf16.mxu0 0
  %665 = vmatpush1.bf16.msra.mxu0 0
  %666 = vmatprep.subr.bf16.mxu0 0
  %667 = vmatpush1.bf16.msra.mxu0 0
  %668 = vmatprep.subr.bf16.mxu0 0
  %669 = vmatpush1.bf16.msra.mxu0 0
  %670 = vmatprep.subr.bf16.mxu0 0
  %671 = vmatpush1.bf16.msra.mxu0 0
  %672 = vmatprep.subr.bf16.mxu0 0
  %673 = vmatpush1.bf16.msra.mxu0 0
  %674 = vmatprep.subr.bf16.mxu0 0
  %675 = vmatpush1.bf16.msra.mxu0 0
  %676 = vmatprep.subr.bf16.mxu0 0
  %677 = vmatpush1.bf16.msra.mxu0 0
  %678 = vmatprep.subr.bf16.mxu0 0
  %679 = vmatpush1.bf16.msra.mxu0 0
  %680 = vmatprep.subr.bf16.mxu0 0
  %681 = vmatpush1.bf16.msra.mxu0 0
  %682 = vmatprep.mubr.bf16.mxu0 0
  %683 = vmatmul.mubr.bf16.gmra.mrb[0].mxu0 %v554
  %v684 = vpop.f32.mrb[0].mxu0
  %v685 = vadd.f32 0.0, %v684
  %v686 = vpop.f32.mrb[0].mxu0
  %v687 = vadd.f32 0.0, %v686
  %v688 = vpop.f32.mrb[0].mxu0
  %v689 = vadd.f32 0.0, %v688
  %v690 = vpop.f32.mrb[0].mxu0
  %v691 = vadd.f32 0.0, %v690
  %692 = vdwg.mxu0
  %693 = vmatprep.subr.bf16.mxu0 %v381
  %694 = vmatpush1.bf16.msra.mxu0 %v380
  %695 = vmatprep.subr.bf16.mxu0 %v397
  %696 = vmatpush1.bf16.msra.mxu0 %v396
  %697 = vmatprep.subr.bf16.mxu0 %v413
  %698 = vmatpush1.bf16.msra.mxu0 %v412
  %699 = vmatprep.subr.bf16.mxu0 %v429
  %700 = vmatpush1.bf16.msra.mxu0 %v428
  %701 = vmatprep.subr.bf16.mxu0 %v445
  %702 = vmatpush1.bf16.msra.mxu0 %v444
  %703 = vmatprep.subr.bf16.mxu0 %v575
  %704 = vmatpush1.bf16.msra.mxu0 %v572
  %705 = vmatprep.subr.bf16.mxu0 0
  %706 = vmatpush1.bf16.msra.mxu0 0
  %707 = vmatprep.subr.bf16.mxu0 0
  %708 = vmatpush1.bf16.msra.mxu0 0
  %709 = vmatprep.subr.bf16.mxu0 0
  %710 = vmatpush1.bf16.msra.mxu0 0
  %711 = vmatprep.subr.bf16.mxu0 0
  %712 = vmatpush1.bf16.msra.mxu0 0
  %713 = vmatprep.subr.bf16.mxu0 0
  %714 = vmatpush1.bf16.msra.mxu0 0
  %715 = vmatprep.subr.bf16.mxu0 0
  %716 = vmatpush1.bf16.msra.mxu0 0
  %717 = vmatprep.subr.bf16.mxu0 0
  %718 = vmatpush1.bf16.msra.mxu0 0
  %719 = vmatprep.subr.bf16.mxu0 0
  %720 = vmatpush1.bf16.msra.mxu0 0
  %721 = vmatprep.subr.bf16.mxu0 0
  %722 = vmatpush1.bf16.msra.mxu0 0
  %723 = vmatprep.subr.bf16.mxu0 0
  %724 = vmatpush1.bf16.msra.mxu0 0
  %725 = vmatprep.mubr.bf16.mxu0 0
  %726 = vmatmul.mubr.bf16.gmra.mrb[0].mxu0 %v554
  %v727 = vpop.f32.mrb[0].mxu0
  %v728 = vadd.f32 0.0, %v727
  %v729 = vpop.f32.mrb[0].mxu0
  %v730 = vadd.f32 0.0, %v729
  %v731 = vpop.f32.mrb[0].mxu0
  %v732 = vadd.f32 0.0, %v731
  %v733 = vpop.f32.mrb[0].mxu0
  %v734 = vadd.f32 0.0, %v733
  %735 = vdwg.mxu0
  %736 = vmatprep.subr.bf16.mxu0 %v383
  %737 = vmatpush1.bf16.msra.mxu0 %v382
  %738 = vmatprep.subr.bf16.mxu0 %v399
  %739 = vmatpush1.bf16.msra.mxu0 %v398
  %740 = vmatprep.subr.bf16.mxu0 %v415
  %741 = vmatpush1.bf16.msra.mxu0 %v414
  %742 = vmatprep.subr.bf16.mxu0 %v431
  %743 = vmatpush1.bf16.msra.mxu0 %v430
  %744 = vmatprep.subr.bf16.mxu0 %v447
  %745 = vmatpush1.bf16.msra.mxu0 %v446
  %746 = vmatprep.subr.bf16.mxu0 %v581
  %747 = vmatpush1.bf16.msra.mxu0 %v578
  %748 = vmatprep.subr.bf16.mxu0 0
  %749 = vmatpush1.bf16.msra.mxu0 0
  %750 = vmatprep.subr.bf16.mxu0 0
  %751 = vmatpush1.bf16.msra.mxu0 0
  %752 = vmatprep.subr.bf16.mxu0 0
  %753 = vmatpush1.bf16.msra.mxu0 0
  %754 = vmatprep.subr.bf16.mxu0 0
  %755 = vmatpush1.bf16.msra.mxu0 0
  %756 = vmatprep.subr.bf16.mxu0 0
  %757 = vmatpush1.bf16.msra.mxu0 0
  %758 = vmatprep.subr.bf16.mxu0 0
  %759 = vmatpush1.bf16.msra.mxu0 0
  %760 = vmatprep.subr.bf16.mxu0 0
  %761 = vmatpush1.bf16.msra.mxu0 0
  %762 = vmatprep.subr.bf16.mxu0 0
  %763 = vmatpush1.bf16.msra.mxu0 0
  %764 = vmatprep.subr.bf16.mxu0 0
  %765 = vmatpush1.bf16.msra.mxu0 0
  %766 = vmatprep.subr.bf16.mxu0 0
  %767 = vmatpush1.bf16.msra.mxu0 0
  %768 = vmatprep.mubr.bf16.mxu0 0
  %769 = vmatmul.mubr.bf16.gmra.mrb[0].mxu0 %v554
  %v770 = vpop.f32.mrb[0].mxu0
  %v771 = vadd.f32 0.0, %v770
  %v772 = vpop.f32.mrb[0].mxu0
  %v773 = vadd.f32 0.0, %v772
  %v774 = vpop.f32.mrb[0].mxu0
  %v775 = vadd.f32 0.0, %v774
  %v776 = vpop.f32.mrb[0].mxu0
  %v777 = vadd.f32 0.0, %v776
  %778 = vdwg.mxu0
  %779 = vmatprep.subr.bf16.mxu0 %v385
  %780 = vmatpush1.bf16.msra.mxu0 %v384
  %781 = vmatprep.subr.bf16.mxu0 %v401
  %782 = vmatpush1.bf16.msra.mxu0 %v400
  %783 = vmatprep.subr.bf16.mxu0 %v417
  %784 = vmatpush1.bf16.msra.mxu0 %v416
  %785 = vmatprep.subr.bf16.mxu0 %v433
  %786 = vmatpush1.bf16.msra.mxu0 %v432
  %787 = vmatprep.subr.bf16.mxu0 %v449
  %788 = vmatpush1.bf16.msra.mxu0 %v448
  %789 = vmatprep.subr.bf16.mxu0 %v587
  %790 = vmatpush1.bf16.msra.mxu0 %v584
  %791 = vmatprep.subr.bf16.mxu0 0
  %792 = vmatpush1.bf16.msra.mxu0 0
  %793 = vmatprep.subr.bf16.mxu0 0
  %794 = vmatpush1.bf16.msra.mxu0 0
  %795 = vmatprep.subr.bf16.mxu0 0
  %796 = vmatpush1.bf16.msra.mxu0 0
  %797 = vmatprep.subr.bf16.mxu0 0
  %798 = vmatpush1.bf16.msra.mxu0 0
  %799 = vmatprep.subr.bf16.mxu0 0
  %800 = vmatpush1.bf16.msra.mxu0 0
  %801 = vmatprep.subr.bf16.mxu0 0
  %802 = vmatpush1.bf16.msra.mxu0 0
  %803 = vmatprep.subr.bf16.mxu0 0
  %804 = vmatpush1.bf16.msra.mxu0 0
  %805 = vmatprep.subr.bf16.mxu0 0
  %806 = vmatpush1.bf16.msra.mxu0 0
  %807 = vmatprep.subr.bf16.mxu0 0
  %808 = vmatpush1.bf16.msra.mxu0 0
  %809 = vmatprep.subr.bf16.mxu0 0
  %810 = vmatpush1.bf16.msra.mxu0 0
  %811 = vmatprep.mubr.bf16.mxu0 0
  %812 = vmatmul.mubr.bf16.gmra.mrb[0].mxu0 %v554
  %v813 = vpop.f32.mrb[0].mxu0
  %v814 = vadd.f32 0.0, %v813
  %v815 = vpop.f32.mrb[0].mxu0
  %v816 = vadd.f32 0.0, %v815
  %v817 = vpop.f32.mrb[0].mxu0
  %v818 = vadd.f32 0.0, %v817
  %v819 = vpop.f32.mrb[0].mxu0
  %v820 = vadd.f32 0.0, %v819
  %821 = vdwg.mxu0
  %822 = vmatprep.subr.bf16.mxu0 %v387
  %823 = vmatpush1.bf16.msra.mxu0 %v386
  %824 = vmatprep.subr.bf16.mxu0 %v403
  %825 = vmatpush1.bf16.msra.mxu0 %v402
  %826 = vmatprep.subr.bf16.mxu0 %v419
  %827 = vmatpush1.bf16.msra.mxu0 %v418
  %828 = vmatprep.subr.bf16.mxu0 %v435
  %829 = vmatpush1.bf16.msra.mxu0 %v434
  %830 = vmatprep.subr.bf16.mxu0 %v451
  %831 = vmatpush1.bf16.msra.mxu0 %v450
  %832 = vmatprep.subr.bf16.mxu0 %v593
  %833 = vmatpush1.bf16.msra.mxu0 %v590
  %834 = vmatprep.subr.bf16.mxu0 0
  %835 = vmatpush1.bf16.msra.mxu0 0
  %836 = vmatprep.subr.bf16.mxu0 0
  %837 = vmatpush1.bf16.msra.mxu0 0
  %838 = vmatprep.subr.bf16.mxu0 0
  %839 = vmatpush1.bf16.msra.mxu0 0
  %840 = vmatprep.subr.bf16.mxu0 0
  %841 = vmatpush1.bf16.msra.mxu0 0
  %842 = vmatprep.subr.bf16.mxu0 0
  %843 = vmatpush1.bf16.msra.mxu0 0
  %844 = vmatprep.subr.bf16.mxu0 0
  %845 = vmatpush1.bf16.msra.mxu0 0
  %846 = vmatprep.subr.bf16.mxu0 0
  %847 = vmatpush1.bf16.msra.mxu0 0
  %848 = vmatprep.subr.bf16.mxu0 0
  %849 = vmatpush1.bf16.msra.mxu0 0
  %850 = vmatprep.subr.bf16.mxu0 0
  %851 = vmatpush1.bf16.msra.mxu0 0
  %852 = vmatprep.subr.bf16.mxu0 0
  %853 = vmatpush1.bf16.msra.mxu0 0
  %854 = vmatprep.mubr.bf16.mxu0 0
  %855 = vmatmul.mubr.bf16.gmra.mrb[0].mxu0 %v554
  %v856 = vpop.f32.mrb[0].mxu0
  %v857 = vadd.f32 0.0, %v856
  %v858 = vpop.f32.mrb[0].mxu0
  %v859 = vadd.f32 0.0, %v858
  %v860 = vpop.f32.mrb[0].mxu0
  %v861 = vadd.f32 0.0, %v860
  %v862 = vpop.f32.mrb[0].mxu0
  %v863 = vadd.f32 0.0, %v862
  %864 = vdwg.mxu0
  %865 = vmatprep.subr.bf16.mxu0 %v389
  %866 = vmatpush1.bf16.msra.mxu0 %v388
  %867 = vmatprep.subr.bf16.mxu0 %v405
  %868 = vmatpush1.bf16.msra.mxu0 %v404
  %869 = vmatprep.subr.bf16.mxu0 %v421
  %870 = vmatpush1.bf16.msra.mxu0 %v420
  %871 = vmatprep.subr.bf16.mxu0 %v437
  %872 = vmatpush1.bf16.msra.mxu0 %v436
  %873 = vmatprep.subr.bf16.mxu0 %v453
  %874 = vmatpush1.bf16.msra.mxu0 %v452
  %875 = vmatprep.subr.bf16.mxu0 %v599
  %876 = vmatpush1.bf16.msra.mxu0 %v596
  %877 = vmatprep.subr.bf16.mxu0 0
  %878 = vmatpush1.bf16.msra.mxu0 0
  %879 = vmatprep.subr.bf16.mxu0 0
  %880 = vmatpush1.bf16.msra.mxu0 0
  %881 = vmatprep.subr.bf16.mxu0 0
  %882 = vmatpush1.bf16.msra.mxu0 0
  %883 = vmatprep.subr.bf16.mxu0 0
  %884 = vmatpush1.bf16.msra.mxu0 0
  %885 = vmatprep.subr.bf16.mxu0 0
  %886 = vmatpush1.bf16.msra.mxu0 0
  %887 = vmatprep.subr.bf16.mxu0 0
  %888 = vmatpush1.bf16.msra.mxu0 0
  %889 = vmatprep.subr.bf16.mxu0 0
  %890 = vmatpush1.bf16.msra.mxu0 0
  %891 = vmatprep.subr.bf16.mxu0 0
  %892 = vmatpush1.bf16.msra.mxu0 0
  %893 = vmatprep.subr.bf16.mxu0 0
  %894 = vmatpush1.bf16.msra.mxu0 0
  %895 = vmatprep.subr.bf16.mxu0 0
  %896 = vmatpush1.bf16.msra.mxu0 0
  %897 = vmatprep.mubr.bf16.mxu0 0
  %898 = vmatmul.mubr.bf16.gmra.mrb[0].mxu0 %v554
  %v899 = vpop.f32.mrb[0].mxu0
  %v900 = vadd.f32 0.0, %v899
  %v901 = vpop.f32.mrb[0].mxu0
  %v902 = vadd.f32 0.0, %v901
  %v903 = vpop.f32.mrb[0].mxu0
  %v904 = vadd.f32 0.0, %v903
  %v905 = vpop.f32.mrb[0].mxu0
  %v906 = vadd.f32 0.0, %v905
  %907 = vdwg.mxu0
  %908 = vmatprep.subr.bf16.mxu0 %v391
  %909 = vmatpush1.bf16.msra.mxu0 %v390
  %910 = vmatprep.subr.bf16.mxu0 %v407
  %911 = vmatpush1.bf16.msra.mxu0 %v406
  %912 = vmatprep.subr.bf16.mxu0 %v423
  %913 = vmatpush1.bf16.msra.mxu0 %v422
  %914 = vmatprep.subr.bf16.mxu0 %v439
  %915 = vmatpush1.bf16.msra.mxu0 %v438
  %916 = vmatprep.subr.bf16.mxu0 %v455
  %917 = vmatpush1.bf16.msra.mxu0 %v454
  %918 = vmatprep.subr.bf16.mxu0 %v605
  %919 = vmatpush1.bf16.msra.mxu0 %v602
  %920 = vmatprep.subr.bf16.mxu0 0
  %921 = vmatpush1.bf16.msra.mxu0 0
  %922 = vmatprep.subr.bf16.mxu0 0
  %923 = vmatpush1.bf16.msra.mxu0 0
  %924 = vmatprep.subr.bf16.mxu0 0
  %925 = vmatpush1.bf16.msra.mxu0 0
  %926 = vmatprep.subr.bf16.mxu0 0
  %927 = vmatpush1.bf16.msra.mxu0 0
  %928 = vmatprep.subr.bf16.mxu0 0
  %929 = vmatpush1.bf16.msra.mxu0 0
  %930 = vmatprep.subr.bf16.mxu0 0
  %931 = vmatpush1.bf16.msra.mxu0 0
  %932 = vmatprep.subr.bf16.mxu0 0
  %933 = vmatpush1.bf16.msra.mxu0 0
  %934 = vmatprep.subr.bf16.mxu0 0
  %935 = vmatpush1.bf16.msra.mxu0 0
  %936 = vmatprep.subr.bf16.mxu0 0
  %937 = vmatpush1.bf16.msra.mxu0 0
  %938 = vmatprep.subr.bf16.mxu0 0
  %939 = vmatpush1.bf16.msra.mxu0 0
  %940 = vmatprep.mubr.bf16.mxu0 0
  %941 = vmatmul.mubr.bf16.gmra.mrb[0].mxu0 %v554
  %v942 = vpop.f32.mrb[0].mxu0
  %v943 = vadd.f32 0.0, %v942
  %v944 = vpop.f32.mrb[0].mxu0
  %v945 = vadd.f32 0.0, %v944
  %v946 = vpop.f32.mrb[0].mxu0
  %v947 = vadd.f32 0.0, %v946
  %v948 = vpop.f32.mrb[0].mxu0
  %v949 = vadd.f32 0.0, %v948
  %950 = vdwg.mxu0
  %951 = vrot.lane.b32.xlu0 %v642, 127
  %v952 = vpop.permute.xlu0 %951
  %953 = vrot.lane.b32.xlu0 %v646, 127
  %v954 = vpop.permute.xlu0 %953
  %955 = vrot.lane.b32.xlu0 %v644, 127
  %v956 = vpop.permute.xlu0 %955
  %957 = vrot.lane.b32.xlu0 %v648, 127
  %v958 = vpop.permute.xlu0 %957
  %959 = vrot.lane.b32.xlu0 %v685, 127
  %v960 = vpop.permute.xlu0 %959
  %961 = vrot.lane.b32.xlu0 %v689, 127
  %v962 = vpop.permute.xlu0 %961
  %963 = vrot.lane.b32.xlu0 %v687, 127
  %v964 = vpop.permute.xlu0 %963
  %965 = vrot.lane.b32.xlu0 %v691, 127
  %v966 = vpop.permute.xlu0 %965
  %967 = vrot.lane.b32.xlu0 %v728, 127
  %v968 = vpop.permute.xlu0 %967
  %969 = vrot.lane.b32.xlu0 %v732, 127
  %v970 = vpop.permute.xlu0 %969
  %971 = vrot.lane.b32.xlu0 %v730, 127
  %v972 = vpop.permute.xlu0 %971
  %973 = vrot.lane.b32.xlu0 %v734, 127
  %v974 = vpop.permute.xlu0 %973
  %975 = vrot.lane.b32.xlu0 %v771, 127
  %v976 = vpop.permute.xlu0 %975
  %977 = vrot.lane.b32.xlu0 %v775, 127
  %v978 = vpop.permute.xlu0 %977
  %979 = vrot.lane.b32.xlu0 %v773, 127
  %v980 = vpop.permute.xlu0 %979
  %981 = vrot.lane.b32.xlu0 %v777, 127
  %v982 = vpop.permute.xlu0 %981
  %983 = vrot.lane.b32.xlu0 %v814, 127
  %v984 = vpop.permute.xlu0 %983
  %985 = vrot.lane.b32.xlu0 %v818, 127
  %v986 = vpop.permute.xlu0 %985
  %987 = vrot.lane.b32.xlu0 %v816, 127
  %v988 = vpop.permute.xlu0 %987
  %989 = vrot.lane.b32.xlu0 %v820, 127
  %v990 = vpop.permute.xlu0 %989
  %991 = vrot.lane.b32.xlu0 %v857, 127
  %v992 = vpop.permute.xlu0 %991
  %993 = vrot.lane.b32.xlu0 %v861, 127
  %v994 = vpop.permute.xlu0 %993
  %995 = vrot.lane.b32.xlu0 %v859, 127
  %v996 = vpop.permute.xlu0 %995
  %997 = vrot.lane.b32.xlu0 %v863, 127
  %v998 = vpop.permute.xlu0 %997
  %999 = vrot.lane.b32.xlu0 %v900, 127
  %v1000 = vpop.permute.xlu0 %999
  %1001 = vrot.lane.b32.xlu0 %v904, 127
  %v1002 = vpop.permute.xlu0 %1001
  %1003 = vrot.lane.b32.xlu0 %v902, 127
  %v1004 = vpop.permute.xlu0 %1003
  %1005 = vrot.lane.b32.xlu0 %v906, 127
  %v1006 = vpop.permute.xlu0 %1005
  %1007 = vrot.lane.b32.xlu0 %v943, 127
  %v1008 = vpop.permute.xlu0 %1007
  %1009 = vrot.lane.b32.xlu0 %v947, 127
  %v1010 = vpop.permute.xlu0 %1009
  %1011 = vrot.lane.b32.xlu0 %v945, 127
  %v1012 = vpop.permute.xlu0 %1011
  %1013 = vrot.lane.b32.xlu0 %v949, 127
  %v1014 = vpop.permute.xlu0 %1013
  %v1015 = vlaneseq
  %v1016 = vand.u32 %v1015, 127
  %vm1017 = vcmp.lt.s32.totalorder %v1016, 127
  %v1018 = vsel %vm1017, %v1008, %v1012
  %v1019 = vsel %vm1017, %v1010, %v1014
  %v1020 = vsel %vm1017, %v1004, %v1008
  %v1021 = vsel %vm1017, %v1006, %v1010
  %v1022 = vsel %vm1017, %v1000, %v1004
  %v1023 = vsel %vm1017, %v1002, %v1006
  %v1024 = vsel %vm1017, %v996, %v1000
  %v1025 = vsel %vm1017, %v998, %v1002
  %v1026 = vsel %vm1017, %v992, %v996
  %v1027 = vsel %vm1017, %v994, %v998
  %v1028 = vsel %vm1017, %v988, %v992
  %v1029 = vsel %vm1017, %v990, %v994
  %v1030 = vsel %vm1017, %v984, %v988
  %v1031 = vsel %vm1017, %v986, %v990
  %v1032 = vsel %vm1017, %v980, %v984
  %v1033 = vsel %vm1017, %v982, %v986
  %v1034 = vsel %vm1017, %v976, %v980
  %v1035 = vsel %vm1017, %v978, %v982
  %v1036 = vsel %vm1017, %v972, %v976
  %v1037 = vsel %vm1017, %v974, %v978
  %v1038 = vsel %vm1017, %v968, %v972
  %v1039 = vsel %vm1017, %v970, %v974
  %v1040 = vsel %vm1017, %v964, %v968
  %v1041 = vsel %vm1017, %v966, %v970
  %v1042 = vsel %vm1017, %v960, %v964
  %v1043 = vsel %vm1017, %v962, %v966
  %v1044 = vsel %vm1017, %v956, %v960
  %v1045 = vsel %vm1017, %v958, %v962
  %v1046 = vsel %vm1017, %v952, %v956
  %v1047 = vsel %vm1017, %v954, %v958
  %v1048 = vsel %vm1017, %v1012, %v952
  %v1049 = vsel %vm1017, %v1014, %v954
  %v1050 = vmax.f32 %v642, %v1046
  %v1051 = vmax.f32 %v644, %v1044
  %v1052 = vmax.f32 %v685, %v1042
  %v1053 = vmax.f32 %v687, %v1040
  %v1054 = vmax.f32 %v728, %v1038
  %v1055 = vmax.f32 %v730, %v1036
  %v1056 = vmax.f32 %v771, %v1034
  %v1057 = vmax.f32 %v773, %v1032
  %v1058 = vmax.f32 %v814, %v1030
  %v1059 = vmax.f32 %v816, %v1028
  %v1060 = vmax.f32 %v857, %v1026
  %v1061 = vmax.f32 %v859, %v1024
  %v1062 = vmax.f32 %v900, %v1022
  %v1063 = vmax.f32 %v902, %v1020
  %v1064 = vmax.f32 %v943, %v1018
  %v1065 = vmax.f32 %v945, %v1048
  %v1066 = vmax.f32 %v646, %v1047
  %v1067 = vmax.f32 %v648, %v1045
  %v1068 = vmax.f32 %v689, %v1043
  %v1069 = vmax.f32 %v691, %v1041
  %v1070 = vmax.f32 %v732, %v1039
  %v1071 = vmax.f32 %v734, %v1037
  %v1072 = vmax.f32 %v775, %v1035
  %v1073 = vmax.f32 %v777, %v1033
  %v1074 = vmax.f32 %v818, %v1031
  %v1075 = vmax.f32 %v820, %v1029
  %v1076 = vmax.f32 %v861, %v1027
  %v1077 = vmax.f32 %v863, %v1025
  %v1078 = vmax.f32 %v904, %v1023
  %v1079 = vmax.f32 %v906, %v1021
  %v1080 = vmax.f32 %v947, %v1019
  %v1081 = vmax.f32 %v949, %v1049
  %1082 = vrot.lane.b32.xlu0 %v1050, 112
  %v1083 = vpop.permute.xlu0 %1082
  %1084 = vrot.lane.b32.xlu0 %v1066, 112
  %v1085 = vpop.permute.xlu0 %1084
  %1086 = vrot.lane.b32.xlu0 %v1051, 112
  %v1087 = vpop.permute.xlu0 %1086
  %1088 = vrot.lane.b32.xlu0 %v1067, 112
  %v1089 = vpop.permute.xlu0 %1088
  %1090 = vrot.lane.b32.xlu0 %v1052, 112
  %v1091 = vpop.permute.xlu0 %1090
  %1092 = vrot.lane.b32.xlu0 %v1068, 112
  %v1093 = vpop.permute.xlu0 %1092
  %1094 = vrot.lane.b32.xlu0 %v1053, 112
  %v1095 = vpop.permute.xlu0 %1094
  %1096 = vrot.lane.b32.xlu0 %v1069, 112
  %v1097 = vpop.permute.xlu0 %1096
  %1098 = vrot.lane.b32.xlu0 %v1054, 112
  %v1099 = vpop.permute.xlu0 %1098
  %1100 = vrot.lane.b32.xlu0 %v1070, 112
  %v1101 = vpop.permute.xlu0 %1100
  %1102 = vrot.lane.b32.xlu0 %v1055, 112
  %v1103 = vpop.permute.xlu0 %1102
  %1104 = vrot.lane.b32.xlu0 %v1071, 112
  %v1105 = vpop.permute.xlu0 %1104
  %1106 = vrot.lane.b32.xlu0 %v1056, 112
  %v1107 = vpop.permute.xlu0 %1106
  %1108 = vrot.lane.b32.xlu0 %v1072, 112
  %v1109 = vpop.permute.xlu0 %1108
  %1110 = vrot.lane.b32.xlu0 %v1057, 112
  %v1111 = vpop.permute.xlu0 %1110
  %1112 = vrot.lane.b32.xlu0 %v1073, 112
  %v1113 = vpop.permute.xlu0 %1112
  %1114 = vrot.lane.b32.xlu0 %v1058, 112
  %v1115 = vpop.permute.xlu0 %1114
  %1116 = vrot.lane.b32.xlu0 %v1074, 112
  %v1117 = vpop.permute.xlu0 %1116
  %1118 = vrot.lane.b32.xlu0 %v1059, 112
  %v1119 = vpop.permute.xlu0 %1118
  %1120 = vrot.lane.b32.xlu0 %v1075, 112
  %v1121 = vpop.permute.xlu0 %1120
  %1122 = vrot.lane.b32.xlu0 %v1060, 112
  %v1123 = vpop.permute.xlu0 %1122
  %1124 = vrot.lane.b32.xlu0 %v1076, 112
  %v1125 = vpop.permute.xlu0 %1124
  %1126 = vrot.lane.b32.xlu0 %v1061, 112
  %v1127 = vpop.permute.xlu0 %1126
  %1128 = vrot.lane.b32.xlu0 %v1077, 112
  %v1129 = vpop.permute.xlu0 %1128
  %1130 = vrot.lane.b32.xlu0 %v1062, 112
  %v1131 = vpop.permute.xlu0 %1130
  %1132 = vrot.lane.b32.xlu0 %v1078, 112
  %v1133 = vpop.permute.xlu0 %1132
  %1134 = vrot.lane.b32.xlu0 %v1063, 112
  %v1135 = vpop.permute.xlu0 %1134
  %1136 = vrot.lane.b32.xlu0 %v1079, 112
  %v1137 = vpop.permute.xlu0 %1136
  %1138 = vrot.lane.b32.xlu0 %v1064, 112
  %v1139 = vpop.permute.xlu0 %1138
  %1140 = vrot.lane.b32.xlu0 %v1080, 112
  %v1141 = vpop.permute.xlu0 %1140
  %1142 = vrot.lane.b32.xlu0 %v1065, 112
  %v1143 = vpop.permute.xlu0 %1142
  %1144 = vrot.lane.b32.xlu0 %v1081, 112
  %v1145 = vpop.permute.xlu0 %1144
  %vm1146 = vcmp.lt.s32.totalorder %v1016, 112
  %v1147 = vsel %vm1146, %v1139, %v1143
  %v1148 = vsel %vm1146, %v1141, %v1145
  %v1149 = vsel %vm1146, %v1135, %v1139
  %v1150 = vsel %vm1146, %v1137, %v1141
  %v1151 = vsel %vm1146, %v1131, %v1135
  %v1152 = vsel %vm1146, %v1133, %v1137
  %v1153 = vsel %vm1146, %v1127, %v1131
  %v1154 = vsel %vm1146, %v1129, %v1133
  %v1155 = vsel %vm1146, %v1123, %v1127
  %v1156 = vsel %vm1146, %v1125, %v1129
  %v1157 = vsel %vm1146, %v1119, %v1123
  %v1158 = vsel %vm1146, %v1121, %v1125
  %v1159 = vsel %vm1146, %v1115, %v1119
  %v1160 = vsel %vm1146, %v1117, %v1121
  %v1161 = vsel %vm1146, %v1111, %v1115
  %v1162 = vsel %vm1146, %v1113, %v1117
  %v1163 = vsel %vm1146, %v1107, %v1111
  %v1164 = vsel %vm1146, %v1109, %v1113
  %v1165 = vsel %vm1146, %v1103, %v1107
  %v1166 = vsel %vm1146, %v1105, %v1109
  %v1167 = vsel %vm1146, %v1099, %v1103
  %v1168 = vsel %vm1146, %v1101, %v1105
  %v1169 = vsel %vm1146, %v1095, %v1099
  %v1170 = vsel %vm1146, %v1097, %v1101
  %v1171 = vsel %vm1146, %v1091, %v1095
  %v1172 = vsel %vm1146, %v1093, %v1097
  %v1173 = vsel %vm1146, %v1087, %v1091
  %v1174 = vsel %vm1146, %v1089, %v1093
  %v1175 = vsel %vm1146, %v1083, %v1087
  %v1176 = vsel %vm1146, %v1085, %v1089
  %v1177 = vsel %vm1146, %v1143, %v1083
  %v1178 = vsel %vm1146, %v1145, %v1085
  %v1179 = vmax.f32 %v1050, %v1175
  %v1180 = vmax.f32 %v1051, %v1173
  %v1181 = vmax.f32 %v1052, %v1171
  %v1182 = vmax.f32 %v1053, %v1169
  %v1183 = vmax.f32 %v1054, %v1167
  %v1184 = vmax.f32 %v1055, %v1165
  %v1185 = vmax.f32 %v1056, %v1163
  %v1186 = vmax.f32 %v1057, %v1161
  %v1187 = vmax.f32 %v1058, %v1159
  %v1188 = vmax.f32 %v1059, %v1157
  %v1189 = vmax.f32 %v1060, %v1155
  %v1190 = vmax.f32 %v1061, %v1153
  %v1191 = vmax.f32 %v1062, %v1151
  %v1192 = vmax.f32 %v1063, %v1149
  %v1193 = vmax.f32 %v1064, %v1147
  %v1194 = vmax.f32 %v1065, %v1177
  %v1195 = vmax.f32 %v1066, %v1176
  %v1196 = vmax.f32 %v1067, %v1174
  %v1197 = vmax.f32 %v1068, %v1172
  %v1198 = vmax.f32 %v1069, %v1170
  %v1199 = vmax.f32 %v1070, %v1168
  %v1200 = vmax.f32 %v1071, %v1166
  %v1201 = vmax.f32 %v1072, %v1164
  %v1202 = vmax.f32 %v1073, %v1162
  %v1203 = vmax.f32 %v1074, %v1160
  %v1204 = vmax.f32 %v1075, %v1158
  %v1205 = vmax.f32 %v1076, %v1156
  %v1206 = vmax.f32 %v1077, %v1154
  %v1207 = vmax.f32 %v1078, %v1152
  %v1208 = vmax.f32 %v1079, %v1150
  %v1209 = vmax.f32 %v1080, %v1148
  %v1210 = vmax.f32 %v1081, %v1178
  %v1211 = vmax.f32 %v1179, %v1181
  %v1212 = vmax.f32 %v1180, %v1182
  %v1213 = vmax.f32 %v1181, %v1183
  %v1214 = vmax.f32 %v1182, %v1184
  %v1215 = vmax.f32 %v1183, %v1185
  %v1216 = vmax.f32 %v1184, %v1186
  %v1217 = vmax.f32 %v1185, %v1187
  %v1218 = vmax.f32 %v1186, %v1188
  %v1219 = vmax.f32 %v1187, %v1189
  %v1220 = vmax.f32 %v1188, %v1190
  %v1221 = vmax.f32 %v1189, %v1191
  %v1222 = vmax.f32 %v1190, %v1192
  %v1223 = vmax.f32 %v1191, %v1193
  %v1224 = vmax.f32 %v1192, %v1194
  %v1225 = vmax.f32 %v1193, %v1179
  %v1226 = vmax.f32 %v1194, %v1180
  %v1227 = vmax.f32 %v1195, %v1197
  %v1228 = vmax.f32 %v1196, %v1198
  %v1229 = vmax.f32 %v1197, %v1199
  %v1230 = vmax.f32 %v1198, %v1200
  %v1231 = vmax.f32 %v1199, %v1201
  %v1232 = vmax.f32 %v1200, %v1202
  %v1233 = vmax.f32 %v1201, %v1203
  %v1234 = vmax.f32 %v1202, %v1204
  %v1235 = vmax.f32 %v1203, %v1205
  %v1236 = vmax.f32 %v1204, %v1206
  %v1237 = vmax.f32 %v1205, %v1207
  %v1238 = vmax.f32 %v1206, %v1208
  %v1239 = vmax.f32 %v1207, %v1209
  %v1240 = vmax.f32 %v1208, %v1210
  %v1241 = vmax.f32 %v1209, %v1195
  %v1242 = vmax.f32 %v1210, %v1196
  %1244 = vset.pattern.permute.xlu0 0
  %1245 = vperm.xlu0 %1244, %v17
  %v1246 = vpop.permute.xlu0 %1245
  %1249 = vset.pattern.permute.xlu0 0
  %1250 = vperm.xlu0 %1249, %v18
  %v1251 = vpop.permute.xlu0 %1250
  %v1253 = vadd.f32 %v1211, %v1246
  %v1254 = vadd.f32 %v1212, %v1246
  %v1255 = vadd.f32 %v1213, %v1246
  %v1256 = vadd.f32 %v1214, %v1246
  %v1257 = vadd.f32 %v1215, %v1246
  %v1258 = vadd.f32 %v1216, %v1246
  %v1259 = vadd.f32 %v1217, %v1246
  %v1260 = vadd.f32 %v1218, %v1246
  %v1261 = vadd.f32 %v1219, %v1246
  %v1262 = vadd.f32 %v1220, %v1246
  %v1263 = vadd.f32 %v1221, %v1246
  %v1264 = vadd.f32 %v1222, %v1246
  %v1265 = vadd.f32 %v1223, %v1246
  %v1266 = vadd.f32 %v1224, %v1246
  %v1267 = vadd.f32 %v1225, %v1246
  %v1268 = vadd.f32 %v1226, %v1246
  %v1269 = vadd.f32 %v1227, %v1251
  %v1270 = vadd.f32 %v1228, %v1251
  %v1271 = vadd.f32 %v1229, %v1251
  %v1272 = vadd.f32 %v1230, %v1251
  %v1273 = vadd.f32 %v1231, %v1251
  %v1274 = vadd.f32 %v1232, %v1251
  %v1275 = vadd.f32 %v1233, %v1251
  %v1276 = vadd.f32 %v1234, %v1251
  %v1277 = vadd.f32 %v1235, %v1251
  %v1278 = vadd.f32 %v1236, %v1251
  %v1279 = vadd.f32 %v1237, %v1251
  %v1280 = vadd.f32 %v1238, %v1251
  %v1281 = vadd.f32 %v1239, %v1251
  %v1282 = vadd.f32 %v1240, %v1251
  %v1283 = vadd.f32 %v1241, %v1251
  %v1284 = vadd.f32 %v1242, %v1251
  %v1285 = vmax.f32 %v1253, %v1269
  %v1286 = vrot.slane %v1285, 4
  %v1287 = vmax.f32 %v1285, %v1286
  %v1288 = vrot.slane %v1287, 2
  %v1289 = vmax.f32 %v1287, %v1288
  %v1290 = vrot.slane %v1289, 1
  %v1291 = vmax.f32 %v1289, %v1290
  %v1292 = vmax.f32 %v1254, %v1270
  %v1293 = vrot.slane %v1292, 4
  %v1294 = vmax.f32 %v1292, %v1293
  %v1295 = vrot.slane %v1294, 2
  %v1296 = vmax.f32 %v1294, %v1295
  %v1297 = vrot.slane %v1296, 1
  %v1298 = vmax.f32 %v1296, %v1297
  %v1299 = vmax.f32 %v1255, %v1271
  %v1300 = vrot.slane %v1299, 4
  %v1301 = vmax.f32 %v1299, %v1300
  %v1302 = vrot.slane %v1301, 2
  %v1303 = vmax.f32 %v1301, %v1302
  %v1304 = vrot.slane %v1303, 1
  %v1305 = vmax.f32 %v1303, %v1304
  %v1306 = vmax.f32 %v1256, %v1272
  %v1307 = vrot.slane %v1306, 4
  %v1308 = vmax.f32 %v1306, %v1307
  %v1309 = vrot.slane %v1308, 2
  %v1310 = vmax.f32 %v1308, %v1309
  %v1311 = vrot.slane %v1310, 1
  %v1312 = vmax.f32 %v1310, %v1311
  %v1313 = vmax.f32 %v1257, %v1273
  %v1314 = vrot.slane %v1313, 4
  %v1315 = vmax.f32 %v1313, %v1314
  %v1316 = vrot.slane %v1315, 2
  %v1317 = vmax.f32 %v1315, %v1316
  %v1318 = vrot.slane %v1317, 1
  %v1319 = vmax.f32 %v1317, %v1318
  %v1320 = vmax.f32 %v1258, %v1274
  %v1321 = vrot.slane %v1320, 4
  %v1322 = vmax.f32 %v1320, %v1321
  %v1323 = vrot.slane %v1322, 2
  %v1324 = vmax.f32 %v1322, %v1323
  %v1325 = vrot.slane %v1324, 1
  %v1326 = vmax.f32 %v1324, %v1325
  %v1327 = vmax.f32 %v1259, %v1275
  %v1328 = vrot.slane %v1327, 4
  %v1329 = vmax.f32 %v1327, %v1328
  %v1330 = vrot.slane %v1329, 2
  %v1331 = vmax.f32 %v1329, %v1330
  %v1332 = vrot.slane %v1331, 1
  %v1333 = vmax.f32 %v1331, %v1332
  %v1334 = vmax.f32 %v1260, %v1276
  %v1335 = vrot.slane %v1334, 4
  %v1336 = vmax.f32 %v1334, %v1335
  %v1337 = vrot.slane %v1336, 2
  %v1338 = vmax.f32 %v1336, %v1337
  %v1339 = vrot.slane %v1338, 1
  %v1340 = vmax.f32 %v1338, %v1339
  %v1341 = vmax.f32 %v1261, %v1277
  %v1342 = vrot.slane %v1341, 4
  %v1343 = vmax.f32 %v1341, %v1342
  %v1344 = vrot.slane %v1343, 2
  %v1345 = vmax.f32 %v1343, %v1344
  %v1346 = vrot.slane %v1345, 1
  %v1347 = vmax.f32 %v1345, %v1346
  %v1348 = vmax.f32 %v1262, %v1278
  %v1349 = vrot.slane %v1348, 4
  %v1350 = vmax.f32 %v1348, %v1349
  %v1351 = vrot.slane %v1350, 2
  %v1352 = vmax.f32 %v1350, %v1351
  %v1353 = vrot.slane %v1352, 1
  %v1354 = vmax.f32 %v1352, %v1353
  %v1355 = vmax.f32 %v1263, %v1279
  %v1356 = vrot.slane %v1355, 4
  %v1357 = vmax.f32 %v1355, %v1356
  %v1358 = vrot.slane %v1357, 2
  %v1359 = vmax.f32 %v1357, %v1358
  %v1360 = vrot.slane %v1359, 1
  %v1361 = vmax.f32 %v1359, %v1360
  %v1362 = vmax.f32 %v1264, %v1280
  %v1363 = vrot.slane %v1362, 4
  %v1364 = vmax.f32 %v1362, %v1363
  %v1365 = vrot.slane %v1364, 2
  %v1366 = vmax.f32 %v1364, %v1365
  %v1367 = vrot.slane %v1366, 1
  %v1368 = vmax.f32 %v1366, %v1367
  %v1369 = vmax.f32 %v1265, %v1281
  %v1370 = vrot.slane %v1369, 4
  %v1371 = vmax.f32 %v1369, %v1370
  %v1372 = vrot.slane %v1371, 2
  %v1373 = vmax.f32 %v1371, %v1372
  %v1374 = vrot.slane %v1373, 1
  %v1375 = vmax.f32 %v1373, %v1374
  %v1376 = vmax.f32 %v1266, %v1282
  %v1377 = vrot.slane %v1376, 4
  %v1378 = vmax.f32 %v1376, %v1377
  %v1379 = vrot.slane %v1378, 2
  %v1380 = vmax.f32 %v1378, %v1379
  %v1381 = vrot.slane %v1380, 1
  %v1382 = vmax.f32 %v1380, %v1381
  %v1383 = vmax.f32 %v1267, %v1283
  %v1384 = vrot.slane %v1383, 4
  %v1385 = vmax.f32 %v1383, %v1384
  %v1386 = vrot.slane %v1385, 2
  %v1387 = vmax.f32 %v1385, %v1386
  %v1388 = vrot.slane %v1387, 1
  %v1389 = vmax.f32 %v1387, %v1388
  %v1390 = vmax.f32 %v1268, %v1284
  %v1391 = vrot.slane %v1390, 4
  %v1392 = vmax.f32 %v1390, %v1391
  %v1393 = vrot.slane %v1392, 2
  %v1394 = vmax.f32 %v1392, %v1393
  %v1395 = vrot.slane %v1394, 1
  %v1396 = vmax.f32 %v1394, %v1395
  %v1397 = vsub.f32 %v1253, %v1291
  %v1398 = vsub.f32 %v1254, %v1298
  %v1399 = vsub.f32 %v1255, %v1305
  %v1400 = vsub.f32 %v1256, %v1312
  %v1401 = vsub.f32 %v1257, %v1319
  %v1402 = vsub.f32 %v1258, %v1326
  %v1403 = vsub.f32 %v1259, %v1333
  %v1404 = vsub.f32 %v1260, %v1340
  %v1405 = vsub.f32 %v1261, %v1347
  %v1406 = vsub.f32 %v1262, %v1354
  %v1407 = vsub.f32 %v1263, %v1361
  %v1408 = vsub.f32 %v1264, %v1368
  %v1409 = vsub.f32 %v1265, %v1375
  %v1410 = vsub.f32 %v1266, %v1382
  %v1411 = vsub.f32 %v1267, %v1389
  %v1412 = vsub.f32 %v1268, %v1396
  %v1413 = vsub.f32 %v1269, %v1291
  %v1414 = vsub.f32 %v1270, %v1298
  %v1415 = vsub.f32 %v1271, %v1305
  %v1416 = vsub.f32 %v1272, %v1312
  %v1417 = vsub.f32 %v1273, %v1319
  %v1418 = vsub.f32 %v1274, %v1326
  %v1419 = vsub.f32 %v1275, %v1333
  %v1420 = vsub.f32 %v1276, %v1340
  %v1421 = vsub.f32 %v1277, %v1347
  %v1422 = vsub.f32 %v1278, %v1354
  %v1423 = vsub.f32 %v1279, %v1361
  %v1424 = vsub.f32 %v1280, %v1368
  %v1425 = vsub.f32 %v1281, %v1375
  %v1426 = vsub.f32 %v1282, %v1382
  %v1427 = vsub.f32 %v1283, %v1389
  %v1428 = vsub.f32 %v1284, %v1396
  %v1429 = vmul.f32 %v1397, 1.442695
  %v1430 = vpow.pop %v1429
  %v1431 = vmul.f32 %v1398, 1.442695
  %v1432 = vpow.pop %v1431
  %v1433 = vmul.f32 %v1399, 1.442695
  %v1434 = vpow.pop %v1433
  %v1435 = vmul.f32 %v1400, 1.442695
  %v1436 = vpow.pop %v1435
  %v1437 = vmul.f32 %v1401, 1.442695
  %v1438 = vpow.pop %v1437
  %v1439 = vmul.f32 %v1402, 1.442695
  %v1440 = vpow.pop %v1439
  %v1441 = vmul.f32 %v1403, 1.442695
  %v1442 = vpow.pop %v1441
  %v1443 = vmul.f32 %v1404, 1.442695
  %v1444 = vpow.pop %v1443
  %v1445 = vmul.f32 %v1405, 1.442695
  %v1446 = vpow.pop %v1445
  %v1447 = vmul.f32 %v1406, 1.442695
  %v1448 = vpow.pop %v1447
  %v1449 = vmul.f32 %v1407, 1.442695
  %v1450 = vpow.pop %v1449
  %v1451 = vmul.f32 %v1408, 1.442695
  %v1452 = vpow.pop %v1451
  %v1453 = vmul.f32 %v1409, 1.442695
  %v1454 = vpow.pop %v1453
  %v1455 = vmul.f32 %v1410, 1.442695
  %v1456 = vpow.pop %v1455
  %v1457 = vmul.f32 %v1411, 1.442695
  %v1458 = vpow.pop %v1457
  %v1459 = vmul.f32 %v1412, 1.442695
  %v1460 = vpow.pop %v1459
  %v1461 = vmul.f32 %v1413, 1.442695
  %v1462 = vpow.pop %v1461
  %v1463 = vmul.f32 %v1414, 1.442695
  %v1464 = vpow.pop %v1463
  %v1465 = vmul.f32 %v1415, 1.442695
  %v1466 = vpow.pop %v1465
  %v1467 = vmul.f32 %v1416, 1.442695
  %v1468 = vpow.pop %v1467
  %v1469 = vmul.f32 %v1417, 1.442695
  %v1470 = vpow.pop %v1469
  %v1471 = vmul.f32 %v1418, 1.442695
  %v1472 = vpow.pop %v1471
  %v1473 = vmul.f32 %v1419, 1.442695
  %v1474 = vpow.pop %v1473
  %v1475 = vmul.f32 %v1420, 1.442695
  %v1476 = vpow.pop %v1475
  %v1477 = vmul.f32 %v1421, 1.442695
  %v1478 = vpow.pop %v1477
  %v1479 = vmul.f32 %v1422, 1.442695
  %v1480 = vpow.pop %v1479
  %v1481 = vmul.f32 %v1423, 1.442695
  %v1482 = vpow.pop %v1481
  %v1483 = vmul.f32 %v1424, 1.442695
  %v1484 = vpow.pop %v1483
  %v1485 = vmul.f32 %v1425, 1.442695
  %v1486 = vpow.pop %v1485
  %v1487 = vmul.f32 %v1426, 1.442695
  %v1488 = vpow.pop %v1487
  %v1489 = vmul.f32 %v1427, 1.442695
  %v1490 = vpow.pop %v1489
  %v1491 = vmul.f32 %v1428, 1.442695
  %v1492 = vpow.pop %v1491
  %v1493 = vadd.f32 %v1430, %v1462
  %v1494 = vrot.slane %v1493, 4
  %v1495 = vadd.f32 %v1493, %v1494
  %v1496 = vrot.slane %v1495, 2
  %v1497 = vadd.f32 %v1495, %v1496
  %v1498 = vrot.slane %v1497, 1
  %v1499 = vadd.f32 %v1497, %v1498
  %v1500 = vadd.f32 %v1432, %v1464
  %v1501 = vrot.slane %v1500, 4
  %v1502 = vadd.f32 %v1500, %v1501
  %v1503 = vrot.slane %v1502, 2
  %v1504 = vadd.f32 %v1502, %v1503
  %v1505 = vrot.slane %v1504, 1
  %v1506 = vadd.f32 %v1504, %v1505
  %v1507 = vadd.f32 %v1434, %v1466
  %v1508 = vrot.slane %v1507, 4
  %v1509 = vadd.f32 %v1507, %v1508
  %v1510 = vrot.slane %v1509, 2
  %v1511 = vadd.f32 %v1509, %v1510
  %v1512 = vrot.slane %v1511, 1
  %v1513 = vadd.f32 %v1511, %v1512
  %v1514 = vadd.f32 %v1436, %v1468
  %v1515 = vrot.slane %v1514, 4
  %v1516 = vadd.f32 %v1514, %v1515
  %v1517 = vrot.slane %v1516, 2
  %v1518 = vadd.f32 %v1516, %v1517
  %v1519 = vrot.slane %v1518, 1
  %v1520 = vadd.f32 %v1518, %v1519
  %v1521 = vadd.f32 %v1438, %v1470
  %v1522 = vrot.slane %v1521, 4
  %v1523 = vadd.f32 %v1521, %v1522
  %v1524 = vrot.slane %v1523, 2
  %v1525 = vadd.f32 %v1523, %v1524
  %v1526 = vrot.slane %v1525, 1
  %v1527 = vadd.f32 %v1525, %v1526
  %v1528 = vadd.f32 %v1440, %v1472
  %v1529 = vrot.slane %v1528, 4
  %v1530 = vadd.f32 %v1528, %v1529
  %v1531 = vrot.slane %v1530, 2
  %v1532 = vadd.f32 %v1530, %v1531
  %v1533 = vrot.slane %v1532, 1
  %v1534 = vadd.f32 %v1532, %v1533
  %v1535 = vadd.f32 %v1442, %v1474
  %v1536 = vrot.slane %v1535, 4
  %v1537 = vadd.f32 %v1535, %v1536
  %v1538 = vrot.slane %v1537, 2
  %v1539 = vadd.f32 %v1537, %v1538
  %v1540 = vrot.slane %v1539, 1
  %v1541 = vadd.f32 %v1539, %v1540
  %v1542 = vadd.f32 %v1444, %v1476
  %v1543 = vrot.slane %v1542, 4
  %v1544 = vadd.f32 %v1542, %v1543
  %v1545 = vrot.slane %v1544, 2
  %v1546 = vadd.f32 %v1544, %v1545
  %v1547 = vrot.slane %v1546, 1
  %v1548 = vadd.f32 %v1546, %v1547
  %v1549 = vadd.f32 %v1446, %v1478
  %v1550 = vrot.slane %v1549, 4
  %v1551 = vadd.f32 %v1549, %v1550
  %v1552 = vrot.slane %v1551, 2
  %v1553 = vadd.f32 %v1551, %v1552
  %v1554 = vrot.slane %v1553, 1
  %v1555 = vadd.f32 %v1553, %v1554
  %v1556 = vadd.f32 %v1448, %v1480
  %v1557 = vrot.slane %v1556, 4
  %v1558 = vadd.f32 %v1556, %v1557
  %v1559 = vrot.slane %v1558, 2
  %v1560 = vadd.f32 %v1558, %v1559
  %v1561 = vrot.slane %v1560, 1
  %v1562 = vadd.f32 %v1560, %v1561
  %v1563 = vadd.f32 %v1450, %v1482
  %v1564 = vrot.slane %v1563, 4
  %v1565 = vadd.f32 %v1563, %v1564
  %v1566 = vrot.slane %v1565, 2
  %v1567 = vadd.f32 %v1565, %v1566
  %v1568 = vrot.slane %v1567, 1
  %v1569 = vadd.f32 %v1567, %v1568
  %v1570 = vadd.f32 %v1452, %v1484
  %v1571 = vrot.slane %v1570, 4
  %v1572 = vadd.f32 %v1570, %v1571
  %v1573 = vrot.slane %v1572, 2
  %v1574 = vadd.f32 %v1572, %v1573
  %v1575 = vrot.slane %v1574, 1
  %v1576 = vadd.f32 %v1574, %v1575
  %v1577 = vadd.f32 %v1454, %v1486
  %v1578 = vrot.slane %v1577, 4
  %v1579 = vadd.f32 %v1577, %v1578
  %v1580 = vrot.slane %v1579, 2
  %v1581 = vadd.f32 %v1579, %v1580
  %v1582 = vrot.slane %v1581, 1
  %v1583 = vadd.f32 %v1581, %v1582
  %v1584 = vadd.f32 %v1456, %v1488
  %v1585 = vrot.slane %v1584, 4
  %v1586 = vadd.f32 %v1584, %v1585
  %v1587 = vrot.slane %v1586, 2
  %v1588 = vadd.f32 %v1586, %v1587
  %v1589 = vrot.slane %v1588, 1
  %v1590 = vadd.f32 %v1588, %v1589
  %v1591 = vadd.f32 %v1458, %v1490
  %v1592 = vrot.slane %v1591, 4
  %v1593 = vadd.f32 %v1591, %v1592
  %v1594 = vrot.slane %v1593, 2
  %v1595 = vadd.f32 %v1593, %v1594
  %v1596 = vrot.slane %v1595, 1
  %v1597 = vadd.f32 %v1595, %v1596
  %v1598 = vadd.f32 %v1460, %v1492
  %v1599 = vrot.slane %v1598, 4
  %v1600 = vadd.f32 %v1598, %v1599
  %v1601 = vrot.slane %v1600, 2
  %v1602 = vadd.f32 %v1600, %v1601
  %v1603 = vrot.slane %v1602, 1
  %v1604 = vadd.f32 %v1602, %v1603
  %v1605 = vlog2.pop %v1499
  %v1606 = vmul.f32 %v1605, 0.6931472
  %v1607 = vlog2.pop %v1506
  %v1608 = vmul.f32 %v1607, 0.6931472
  %v1609 = vlog2.pop %v1513
  %v1610 = vmul.f32 %v1609, 0.6931472
  %v1611 = vlog2.pop %v1520
  %v1612 = vmul.f32 %v1611, 0.6931472
  %v1613 = vlog2.pop %v1527
  %v1614 = vmul.f32 %v1613, 0.6931472
  %v1615 = vlog2.pop %v1534
  %v1616 = vmul.f32 %v1615, 0.6931472
  %v1617 = vlog2.pop %v1541
  %v1618 = vmul.f32 %v1617, 0.6931472
  %v1619 = vlog2.pop %v1548
  %v1620 = vmul.f32 %v1619, 0.6931472
  %v1621 = vlog2.pop %v1555
  %v1622 = vmul.f32 %v1621, 0.6931472
  %v1623 = vlog2.pop %v1562
  %v1624 = vmul.f32 %v1623, 0.6931472
  %v1625 = vlog2.pop %v1569
  %v1626 = vmul.f32 %v1625, 0.6931472
  %v1627 = vlog2.pop %v1576
  %v1628 = vmul.f32 %v1627, 0.6931472
  %v1629 = vlog2.pop %v1583
  %v1630 = vmul.f32 %v1629, 0.6931472
  %v1631 = vlog2.pop %v1590
  %v1632 = vmul.f32 %v1631, 0.6931472
  %v1633 = vlog2.pop %v1597
  %v1634 = vmul.f32 %v1633, 0.6931472
  %v1635 = vlog2.pop %v1604
  %v1636 = vmul.f32 %v1635, 0.6931472
  %v1637 = vadd.f32 %v1291, %v1606
  %v1638 = vadd.f32 %v1298, %v1608
  %v1639 = vadd.f32 %v1305, %v1610
  %v1640 = vadd.f32 %v1312, %v1612
  %v1641 = vadd.f32 %v1319, %v1614
  %v1642 = vadd.f32 %v1326, %v1616
  %v1643 = vadd.f32 %v1333, %v1618
  %v1644 = vadd.f32 %v1340, %v1620
  %v1645 = vadd.f32 %v1347, %v1622
  %v1646 = vadd.f32 %v1354, %v1624
  %v1647 = vadd.f32 %v1361, %v1626
  %v1648 = vadd.f32 %v1368, %v1628
  %v1649 = vadd.f32 %v1375, %v1630
  %v1650 = vadd.f32 %v1382, %v1632
  %v1651 = vadd.f32 %v1389, %v1634
  %v1652 = vadd.f32 %v1396, %v1636
  %v1653 = vmax.f32 %v1637, 0.0
  %v1654 = vmax.f32 %v1638, 0.0
  %v1655 = vmax.f32 %v1639, 0.0
  %v1656 = vmax.f32 %v1640, 0.0
  %v1657 = vmax.f32 %v1641, 0.0
  %v1658 = vmax.f32 %v1642, 0.0
  %v1659 = vmax.f32 %v1643, 0.0
  %v1660 = vmax.f32 %v1644, 0.0
  %v1661 = vmax.f32 %v1645, 0.0
  %v1662 = vmax.f32 %v1646, 0.0
  %v1663 = vmax.f32 %v1647, 0.0
  %v1664 = vmax.f32 %v1648, 0.0
  %v1665 = vmax.f32 %v1649, 0.0
  %v1666 = vmax.f32 %v1650, 0.0
  %v1667 = vmax.f32 %v1651, 0.0
  %v1668 = vmax.f32 %v1652, 0.0
  %v1685 = vcombine.low %v1653, %v1654
  %v1686 = vcombine.low %v1655, %v1656
  %v1687 = vcombine.low %v1657, %v1658
  %v1688 = vcombine.low %v1659, %v1660
  %v1690 = vunpack.c.l.s4 1966171168
  %v1691 = vunpack.c.0.s8 %v1690
  %v1692 = vlaneseq
  %v1693 = vshrl.u32 %v1692, 7
  %v1694 = vsub.s32 %v1691, %v1693
  %v1695 = vrot.slane %v1685, %v1694
  %v1697 = vunpack.c.l.s4 1966171168
  %v1698 = vunpack.c.0.s8 %v1697
  %v1699 = vlaneseq
  %v1700 = vshrl.u32 %v1699, 7
  %v1701 = vsub.s32 %v1698, %v1700
  %v1702 = vrot.slane %v1686, %v1701
  %v1704 = vunpack.c.l.s4 1966171168
  %v1705 = vunpack.c.0.s8 %v1704
  %v1706 = vlaneseq
  %v1707 = vshrl.u32 %v1706, 7
  %v1708 = vsub.s32 %v1705, %v1707
  %v1709 = vrot.slane %v1687, %v1708
  %v1711 = vunpack.c.l.s4 1966171168
  %v1712 = vunpack.c.0.s8 %v1711
  %v1713 = vlaneseq
  %v1714 = vshrl.u32 %v1713, 7
  %v1715 = vsub.s32 %v1712, %v1714
  %v1716 = vrot.slane %v1688, %v1715
  %v1717 = vcombine.low %v1695, %v1702
  %v1718 = vcombine.low %v1709, %v1716
  %v1720 = vunpack.c.l.s4 1966171168
  %v1721 = vunpack.c.0.s8 %v1720
  %v1722 = vlaneseq
  %v1723 = vshrl.u32 %v1722, 7
  %v1724 = vsub.s32 %v1721, %v1723
  %v1725 = vrot.slane %v1717, %v1724
  %v1727 = vunpack.c.l.s4 1966171168
  %v1728 = vunpack.c.0.s8 %v1727
  %v1729 = vlaneseq
  %v1730 = vshrl.u32 %v1729, 7
  %v1731 = vsub.s32 %v1728, %v1730
  %v1732 = vrot.slane %v1718, %v1731
  %v1733 = vcombine.low %v1725, %v1732
  %v1734 = vcombine.low %v1661, %v1662
  %v1735 = vcombine.low %v1663, %v1664
  %v1736 = vcombine.low %v1665, %v1666
  %v1737 = vcombine.low %v1667, %v1668
  %v1739 = vunpack.c.l.s4 1966171168
  %v1740 = vunpack.c.0.s8 %v1739
  %v1741 = vlaneseq
  %v1742 = vshrl.u32 %v1741, 7
  %v1743 = vsub.s32 %v1740, %v1742
  %v1744 = vrot.slane %v1734, %v1743
  %v1746 = vunpack.c.l.s4 1966171168
  %v1747 = vunpack.c.0.s8 %v1746
  %v1748 = vlaneseq
  %v1749 = vshrl.u32 %v1748, 7
  %v1750 = vsub.s32 %v1747, %v1749
  %v1751 = vrot.slane %v1735, %v1750
  %v1753 = vunpack.c.l.s4 1966171168
  %v1754 = vunpack.c.0.s8 %v1753
  %v1755 = vlaneseq
  %v1756 = vshrl.u32 %v1755, 7
  %v1757 = vsub.s32 %v1754, %v1756
  %v1758 = vrot.slane %v1736, %v1757
  %v1760 = vunpack.c.l.s4 1966171168
  %v1761 = vunpack.c.0.s8 %v1760
  %v1762 = vlaneseq
  %v1763 = vshrl.u32 %v1762, 7
  %v1764 = vsub.s32 %v1761, %v1763
  %v1765 = vrot.slane %v1737, %v1764
  %v1766 = vcombine.low %v1744, %v1751
  %v1767 = vcombine.low %v1758, %v1765
  %v1769 = vunpack.c.l.s4 1966171168
  %v1770 = vunpack.c.0.s8 %v1769
  %v1771 = vlaneseq
  %v1772 = vshrl.u32 %v1771, 7
  %v1773 = vsub.s32 %v1770, %v1772
  %v1774 = vrot.slane %v1766, %v1773
  %v1776 = vunpack.c.l.s4 1966171168
  %v1777 = vunpack.c.0.s8 %v1776
  %v1778 = vlaneseq
  %v1779 = vshrl.u32 %v1778, 7
  %v1780 = vsub.s32 %v1777, %v1779
  %v1781 = vrot.slane %v1767, %v1780
  %v1782 = vcombine.low %v1774, %v1781
  %1785 = vst [vmem:[%s3] sm:$0xff] %v1733
  %1786 = vst [vmem:[%s3 + $0x8] sm:$0xff] %v1782
  %s1787 = scalar_lea.vmem %s0, 704
  %v1788 = vld [vmem:[%s1787] sm:$0xff]
  %v1789 = vld [vmem:[%s1787 + $0x8] sm:$0xff]
  %v1790 = vld [vmem:[%s1787 + $0x10] sm:$0xff]
  %v1791 = vld [vmem:[%s1787 + $0x18] sm:$0xff]
  %v1792 = vld [vmem:[%s1787 + $0x20] sm:$0xff]
  %v1793 = vld [vmem:[%s1787 + $0x28] sm:$0xff]
  %v1794 = vld [vmem:[%s1787 + $0x30] sm:$0xff]
  %v1795 = vld [vmem:[%s1787 + $0x38] sm:$0xff]
  %v1796 = vld [vmem:[%s1787 + $0x40] sm:$0xff]
  %v1797 = vld [vmem:[%s1787 + $0x48] sm:$0xff]
  %v1798 = vld [vmem:[%s1787 + $0x50] sm:$0xff]
  %v1799 = vld [vmem:[%s1787 + $0x58] sm:$0xff]
  %v1800 = vld [vmem:[%s1787 + $0x60] sm:$0xff]
  %v1801 = vld [vmem:[%s1787 + $0x68] sm:$0xff]
  %v1802 = vld [vmem:[%s1787 + $0x70] sm:$0xff]
  %v1803 = vld [vmem:[%s1787 + $0x78] sm:$0xff]
  %v1804 = vld [vmem:[%s1787 + $0x80] sm:$0xff]
  %v1805 = vld [vmem:[%s1787 + $0x88] sm:$0xff]
  %v1806 = vld [vmem:[%s1787 + $0x90] sm:$0xff]
  %v1807 = vld [vmem:[%s1787 + $0x98] sm:$0xff]
  %v1808 = vld [vmem:[%s1787 + $0xa0] sm:$0xff]
  %v1809 = vld [vmem:[%s1787 + $0xa8] sm:$0xff]
  %v1810 = vld [vmem:[%s1787 + $0xb0] sm:$0xff]
  %v1811 = vld [vmem:[%s1787 + $0xb8] sm:$0xff]
  %v1812 = vld [vmem:[%s1787 + $0xc0] sm:$0xff]
  %v1813 = vld [vmem:[%s1787 + $0xc8] sm:$0xff]
  %v1814 = vld [vmem:[%s1787 + $0xd0] sm:$0xff]
  %v1815 = vld [vmem:[%s1787 + $0xd8] sm:$0xff]
  %v1816 = vld [vmem:[%s1787 + $0xe0] sm:$0xff]
  %v1817 = vld [vmem:[%s1787 + $0xe8] sm:$0xff]
  %v1818 = vld [vmem:[%s1787 + $0xf0] sm:$0xff]
  %v1819 = vld [vmem:[%s1787 + $0xf8] sm:$0xff]
  %v1820 = vld [vmem:[%s1787 + $0x100] sm:$0xff]
  %v1821 = vld [vmem:[%s1787 + $0x108] sm:$0xff]
  %v1822 = vld [vmem:[%s1787 + $0x110] sm:$0xff]
  %v1823 = vld [vmem:[%s1787 + $0x118] sm:$0xff]
  %v1824 = vld [vmem:[%s1787 + $0x120] sm:$0xff]
  %v1825 = vld [vmem:[%s1787 + $0x128] sm:$0xff]
  %v1826 = vld [vmem:[%s1787 + $0x130] sm:$0xff]
  %v1827 = vld [vmem:[%s1787 + $0x138] sm:$0xff]
  %v1828 = vld [vmem:[%s1787 + $0x140] sm:$0xff]
  %v1829 = vld [vmem:[%s1787 + $0x148] sm:$0xff]
  %v1830 = vld [vmem:[%s1787 + $0x150] sm:$0xff]
  %v1831 = vld [vmem:[%s1787 + $0x158] sm:$0xff]
  %v1832 = vld [vmem:[%s1787 + $0x160] sm:$0xff]
  %v1833 = vld [vmem:[%s1787 + $0x168] sm:$0xff]
  %v1834 = vld [vmem:[%s1787 + $0x170] sm:$0xff]
  %v1835 = vld [vmem:[%s1787 + $0x178] sm:$0xff]
  %v1836 = vld [vmem:[%s1787 + $0x180] sm:$0xff]
  %v1837 = vld [vmem:[%s1787 + $0x188] sm:$0xff]
  %v1838 = vld [vmem:[%s1787 + $0x190] sm:$0xff]
  %v1839 = vld [vmem:[%s1787 + $0x198] sm:$0xff]
  %v1840 = vld [vmem:[%s1787 + $0x1a0] sm:$0xff]
  %v1841 = vld [vmem:[%s1787 + $0x1a8] sm:$0xff]
  %v1842 = vld [vmem:[%s1787 + $0x1b0] sm:$0xff]
  %v1843 = vld [vmem:[%s1787 + $0x1b8] sm:$0xff]
  %v1844 = vld [vmem:[%s1787 + $0x1c0] sm:$0xff]
  %v1845 = vld [vmem:[%s1787 + $0x1c8] sm:$0xff]
  %v1846 = vld [vmem:[%s1787 + $0x1d0] sm:$0xff]
  %v1847 = vld [vmem:[%s1787 + $0x1d8] sm:$0xff]
  %v1848 = vld [vmem:[%s1787 + $0x1e0] sm:$0xff]
  %v1849 = vld [vmem:[%s1787 + $0x1e8] sm:$0xff]
  %v1850 = vld [vmem:[%s1787 + $0x1f0] sm:$0xff]
  %v1851 = vld [vmem:[%s1787 + $0x1f8] sm:$0xff]
  %v1852 = vld [vmem:[%s1787 + $0x200] sm:$0xff]
  %v1853 = vld [vmem:[%s1787 + $0x208] sm:$0xff]
  %v1854 = vld [vmem:[%s1787 + $0x210] sm:$0xff]
  %v1855 = vld [vmem:[%s1787 + $0x218] sm:$0xff]
  %v1856 = vld [vmem:[%s1787 + $0x220] sm:$0xff]
  %v1857 = vld [vmem:[%s1787 + $0x228] sm:$0xff]
  %v1858 = vld [vmem:[%s1787 + $0x230] sm:$0xff]
  %v1859 = vld [vmem:[%s1787 + $0x238] sm:$0xff]
  %v1860 = vld [vmem:[%s1787 + $0x240] sm:$0xff]
  %v1861 = vld [vmem:[%s1787 + $0x248] sm:$0xff]
  %v1862 = vld [vmem:[%s1787 + $0x250] sm:$0xff]
  %v1863 = vld [vmem:[%s1787 + $0x258] sm:$0xff]
  %v1864 = vld [vmem:[%s1787 + $0x260] sm:$0xff]
  %v1865 = vld [vmem:[%s1787 + $0x268] sm:$0xff]
  %v1866 = vld [vmem:[%s1787 + $0x270] sm:$0xff]
  %v1867 = vld [vmem:[%s1787 + $0x278] sm:$0xff]
  %v1868 = vld [vmem:[%s1787 + $0x280] sm:$0x11]
  %v1869 = vld [vmem:[%s1787 + $0x288] sm:$0x11]
  %v1870 = vld [vmem:[%s1787 + $0x290] sm:$0x11]
  %v1871 = vld [vmem:[%s1787 + $0x298] sm:$0x11]
  %v1872 = vld [vmem:[%s1787 + $0x2a0] sm:$0x11]
  %v1873 = vld [vmem:[%s1787 + $0x2a8] sm:$0x11]
  %v1874 = vld [vmem:[%s1787 + $0x2b0] sm:$0x11]
  %v1875 = vld [vmem:[%s1787 + $0x2b8] sm:$0x11]
  %v1964 = vunpack.c.l.b16 %v1788
  %v1965 = vunpack.c.h.b16 %v1788
  %v1966 = vunpack.c.l.b16 %v1789
  %v1967 = vunpack.c.h.b16 %v1789
  %v1968 = vunpack.c.l.b16 %v1790
  %v1969 = vunpack.c.h.b16 %v1790
  %v1970 = vunpack.c.l.b16 %v1791
  %v1971 = vunpack.c.h.b16 %v1791
  %v1972 = vunpack.c.l.b16 %v1792
  %v1973 = vunpack.c.h.b16 %v1792
  %v1974 = vunpack.c.l.b16 %v1793
  %v1975 = vunpack.c.h.b16 %v1793
  %v1976 = vunpack.c.l.b16 %v1794
  %v1977 = vunpack.c.h.b16 %v1794
  %v1978 = vunpack.c.l.b16 %v1795
  %v1979 = vunpack.c.h.b16 %v1795
  %v1980 = vunpack.c.l.b16 %v1796
  %v1981 = vunpack.c.h.b16 %v1796
  %v1982 = vunpack.c.l.b16 %v1797
  %v1983 = vunpack.c.h.b16 %v1797
  %v1984 = vunpack.c.l.b16 %v1798
  %v1985 = vunpack.c.h.b16 %v1798
  %v1986 = vunpack.c.l.b16 %v1799
  %v1987 = vunpack.c.h.b16 %v1799
  %v1988 = vunpack.c.l.b16 %v1800
  %v1989 = vunpack.c.h.b16 %v1800
  %v1990 = vunpack.c.l.b16 %v1801
  %v1991 = vunpack.c.h.b16 %v1801
  %v1992 = vunpack.c.l.b16 %v1802
  %v1993 = vunpack.c.h.b16 %v1802
  %v1994 = vunpack.c.l.b16 %v1803
  %v1995 = vunpack.c.h.b16 %v1803
  %v1996 = vunpack.c.l.b16 %v1804
  %v1997 = vunpack.c.h.b16 %v1804
  %v1998 = vunpack.c.l.b16 %v1805
  %v1999 = vunpack.c.h.b16 %v1805
  %v2000 = vunpack.c.l.b16 %v1806
  %v2001 = vunpack.c.h.b16 %v1806
  %v2002 = vunpack.c.l.b16 %v1807
  %v2003 = vunpack.c.h.b16 %v1807
  %v2004 = vunpack.c.l.b16 %v1808
  %v2005 = vunpack.c.h.b16 %v1808
  %v2006 = vunpack.c.l.b16 %v1809
  %v2007 = vunpack.c.h.b16 %v1809
  %v2008 = vunpack.c.l.b16 %v1810
  %v2009 = vunpack.c.h.b16 %v1810
  %v2010 = vunpack.c.l.b16 %v1811
  %v2011 = vunpack.c.h.b16 %v1811
  %v2012 = vunpack.c.l.b16 %v1812
  %v2013 = vunpack.c.h.b16 %v1812
  %v2014 = vunpack.c.l.b16 %v1813
  %v2015 = vunpack.c.h.b16 %v1813
  %v2016 = vunpack.c.l.b16 %v1814
  %v2017 = vunpack.c.h.b16 %v1814
  %v2018 = vunpack.c.l.b16 %v1815
  %v2019 = vunpack.c.h.b16 %v1815
  %v2020 = vunpack.c.l.b16 %v1816
  %v2021 = vunpack.c.h.b16 %v1816
  %v2022 = vunpack.c.l.b16 %v1817
  %v2023 = vunpack.c.h.b16 %v1817
  %v2024 = vunpack.c.l.b16 %v1818
  %v2025 = vunpack.c.h.b16 %v1818
  %v2026 = vunpack.c.l.b16 %v1819
  %v2027 = vunpack.c.h.b16 %v1819
  %v2028 = vunpack.c.l.b16 %v1820
  %v2029 = vunpack.c.h.b16 %v1820
  %v2030 = vunpack.c.l.b16 %v1821
  %v2031 = vunpack.c.h.b16 %v1821
  %v2032 = vunpack.c.l.b16 %v1822
  %v2033 = vunpack.c.h.b16 %v1822
  %v2034 = vunpack.c.l.b16 %v1823
  %v2035 = vunpack.c.h.b16 %v1823
  %v2036 = vunpack.c.l.b16 %v1824
  %v2037 = vunpack.c.h.b16 %v1824
  %v2038 = vunpack.c.l.b16 %v1825
  %v2039 = vunpack.c.h.b16 %v1825
  %v2040 = vunpack.c.l.b16 %v1826
  %v2041 = vunpack.c.h.b16 %v1826
  %v2042 = vunpack.c.l.b16 %v1827
  %v2043 = vunpack.c.h.b16 %v1827
  %v2044 = vunpack.c.l.b16 %v1828
  %v2045 = vunpack.c.h.b16 %v1828
  %v2046 = vunpack.c.l.b16 %v1829
  %v2047 = vunpack.c.h.b16 %v1829
  %v2048 = vunpack.c.l.b16 %v1830
  %v2049 = vunpack.c.h.b16 %v1830
  %v2050 = vunpack.c.l.b16 %v1831
  %v2051 = vunpack.c.h.b16 %v1831
  %v2052 = vunpack.c.l.b16 %v1832
  %v2053 = vunpack.c.h.b16 %v1832
  %v2054 = vunpack.c.l.b16 %v1833
  %v2055 = vunpack.c.h.b16 %v1833
  %v2056 = vunpack.c.l.b16 %v1834
  %v2057 = vunpack.c.h.b16 %v1834
  %v2058 = vunpack.c.l.b16 %v1835
  %v2059 = vunpack.c.h.b16 %v1835
  %v2060 = vunpack.c.l.b16 %v1836
  %v2061 = vunpack.c.h.b16 %v1836
  %v2062 = vunpack.c.l.b16 %v1837
  %v2063 = vunpack.c.h.b16 %v1837
  %v2064 = vunpack.c.l.b16 %v1838
  %v2065 = vunpack.c.h.b16 %v1838
  %v2066 = vunpack.c.l.b16 %v1839
  %v2067 = vunpack.c.h.b16 %v1839
  %v2068 = vunpack.c.l.b16 %v1840
  %v2069 = vunpack.c.h.b16 %v1840
  %v2070 = vunpack.c.l.b16 %v1841
  %v2071 = vunpack.c.h.b16 %v1841
  %v2072 = vunpack.c.l.b16 %v1842
  %v2073 = vunpack.c.h.b16 %v1842
  %v2074 = vunpack.c.l.b16 %v1843
  %v2075 = vunpack.c.h.b16 %v1843
  %v2076 = vunpack.c.l.b16 %v1844
  %v2077 = vunpack.c.h.b16 %v1844
  %v2078 = vunpack.c.l.b16 %v1845
  %v2079 = vunpack.c.h.b16 %v1845
  %v2080 = vunpack.c.l.b16 %v1846
  %v2081 = vunpack.c.h.b16 %v1846
  %v2082 = vunpack.c.l.b16 %v1847
  %v2083 = vunpack.c.h.b16 %v1847
  %v2084 = vunpack.c.l.b16 %v1848
  %v2085 = vunpack.c.h.b16 %v1848
  %v2086 = vunpack.c.l.b16 %v1849
  %v2087 = vunpack.c.h.b16 %v1849
  %v2088 = vunpack.c.l.b16 %v1850
  %v2089 = vunpack.c.h.b16 %v1850
  %v2090 = vunpack.c.l.b16 %v1851
  %v2091 = vunpack.c.h.b16 %v1851
  %v2092 = vunpack.c.l.b16 %v1852
  %v2093 = vunpack.c.h.b16 %v1852
  %v2094 = vunpack.c.l.b16 %v1853
  %v2095 = vunpack.c.h.b16 %v1853
  %v2096 = vunpack.c.l.b16 %v1854
  %v2097 = vunpack.c.h.b16 %v1854
  %v2098 = vunpack.c.l.b16 %v1855
  %v2099 = vunpack.c.h.b16 %v1855
  %v2100 = vunpack.c.l.b16 %v1856
  %v2101 = vunpack.c.h.b16 %v1856
  %v2102 = vunpack.c.l.b16 %v1857
  %v2103 = vunpack.c.h.b16 %v1857
  %v2104 = vunpack.c.l.b16 %v1858
  %v2105 = vunpack.c.h.b16 %v1858
  %v2106 = vunpack.c.l.b16 %v1859
  %v2107 = vunpack.c.h.b16 %v1859
  %v2108 = vunpack.c.l.b16 %v1860
  %v2109 = vunpack.c.h.b16 %v1860
  %v2110 = vunpack.c.l.b16 %v1861
  %v2111 = vunpack.c.h.b16 %v1861
  %v2112 = vunpack.c.l.b16 %v1862
  %v2113 = vunpack.c.h.b16 %v1862
  %v2114 = vunpack.c.l.b16 %v1863
  %v2115 = vunpack.c.h.b16 %v1863
  %v2116 = vunpack.c.l.b16 %v1864
  %v2117 = vunpack.c.h.b16 %v1864
  %v2118 = vunpack.c.l.b16 %v1865
  %v2119 = vunpack.c.h.b16 %v1865
  %v2120 = vunpack.c.l.b16 %v1866
  %v2121 = vunpack.c.h.b16 %v1866
  %v2122 = vunpack.c.l.b16 %v1867
  %v2123 = vunpack.c.h.b16 %v1867
  %v2124 = vunpack.c.l.b16 %v1868
  %v2125 = vunpack.c.h.b16 %v1868
  %v2126 = vunpack.c.l.b16 %v1869
  %v2127 = vunpack.c.h.b16 %v1869
  %v2128 = vunpack.c.l.b16 %v1870
  %v2129 = vunpack.c.h.b16 %v1870
  %v2130 = vunpack.c.l.b16 %v1871
  %v2131 = vunpack.c.h.b16 %v1871
  %v2132 = vunpack.c.l.b16 %v1872
  %v2133 = vunpack.c.h.b16 %v1872
  %v2134 = vunpack.c.l.b16 %v1873
  %v2135 = vunpack.c.h.b16 %v1873
  %v2136 = vunpack.c.l.b16 %v1874
  %v2137 = vunpack.c.h.b16 %v1874
  %v2138 = vunpack.c.l.b16 %v1875
  %v2139 = vunpack.c.h.b16 %v1875
  %v2140 = vpack.c.b16 %v1980, %v1964
  %v2141 = vpack.c.b16 %v1981, %v1965
  %v2142 = vpack.c.b16 %v1982, %v1966
  %v2143 = vpack.c.b16 %v1983, %v1967
  %v2144 = vpack.c.b16 %v1984, %v1968
  %v2145 = vpack.c.b16 %v1985, %v1969
  %v2146 = vpack.c.b16 %v1986, %v1970
  %v2147 = vpack.c.b16 %v1987, %v1971
  %v2148 = vpack.c.b16 %v1988, %v1972
  %v2149 = vpack.c.b16 %v1989, %v1973
  %v2150 = vpack.c.b16 %v1990, %v1974
  %v2151 = vpack.c.b16 %v1991, %v1975
  %v2152 = vpack.c.b16 %v1992, %v1976
  %v2153 = vpack.c.b16 %v1993, %v1977
  %v2154 = vpack.c.b16 %v1994, %v1978
  %v2155 = vpack.c.b16 %v1995, %v1979
  %v2156 = vpack.c.b16 %v2012, %v1996
  %v2157 = vpack.c.b16 %v2013, %v1997
  %v2158 = vpack.c.b16 %v2014, %v1998
  %v2159 = vpack.c.b16 %v2015, %v1999
  %v2160 = vpack.c.b16 %v2016, %v2000
  %v2161 = vpack.c.b16 %v2017, %v2001
  %v2162 = vpack.c.b16 %v2018, %v2002
  %v2163 = vpack.c.b16 %v2019, %v2003
  %v2164 = vpack.c.b16 %v2020, %v2004
  %v2165 = vpack.c.b16 %v2021, %v2005
  %v2166 = vpack.c.b16 %v2022, %v2006
  %v2167 = vpack.c.b16 %v2023, %v2007
  %v2168 = vpack.c.b16 %v2024, %v2008
  %v2169 = vpack.c.b16 %v2025, %v2009
  %v2170 = vpack.c.b16 %v2026, %v2010
  %v2171 = vpack.c.b16 %v2027, %v2011
  %v2172 = vpack.c.b16 %v2044, %v2028
  %v2173 = vpack.c.b16 %v2045, %v2029
  %v2174 = vpack.c.b16 %v2046, %v2030
  %v2175 = vpack.c.b16 %v2047, %v2031
  %v2176 = vpack.c.b16 %v2048, %v2032
  %v2177 = vpack.c.b16 %v2049, %v2033
  %v2178 = vpack.c.b16 %v2050, %v2034
  %v2179 = vpack.c.b16 %v2051, %v2035
  %v2180 = vpack.c.b16 %v2052, %v2036
  %v2181 = vpack.c.b16 %v2053, %v2037
  %v2182 = vpack.c.b16 %v2054, %v2038
  %v2183 = vpack.c.b16 %v2055, %v2039
  %v2184 = vpack.c.b16 %v2056, %v2040
  %v2185 = vpack.c.b16 %v2057, %v2041
  %v2186 = vpack.c.b16 %v2058, %v2042
  %v2187 = vpack.c.b16 %v2059, %v2043
  %v2188 = vpack.c.b16 %v2076, %v2060
  %v2189 = vpack.c.b16 %v2077, %v2061
  %v2190 = vpack.c.b16 %v2078, %v2062
  %v2191 = vpack.c.b16 %v2079, %v2063
  %v2192 = vpack.c.b16 %v2080, %v2064
  %v2193 = vpack.c.b16 %v2081, %v2065
  %v2194 = vpack.c.b16 %v2082, %v2066
  %v2195 = vpack.c.b16 %v2083, %v2067
  %v2196 = vpack.c.b16 %v2084, %v2068
  %v2197 = vpack.c.b16 %v2085, %v2069
  %v2198 = vpack.c.b16 %v2086, %v2070
  %v2199 = vpack.c.b16 %v2087, %v2071
  %v2200 = vpack.c.b16 %v2088, %v2072
  %v2201 = vpack.c.b16 %v2089, %v2073
  %v2202 = vpack.c.b16 %v2090, %v2074
  %v2203 = vpack.c.b16 %v2091, %v2075
  %v2204 = vpack.c.b16 %v2108, %v2092
  %v2205 = vpack.c.b16 %v2109, %v2093
  %v2206 = vpack.c.b16 %v2110, %v2094
  %v2207 = vpack.c.b16 %v2111, %v2095
  %v2208 = vpack.c.b16 %v2112, %v2096
  %v2209 = vpack.c.b16 %v2113, %v2097
  %v2210 = vpack.c.b16 %v2114, %v2098
  %v2211 = vpack.c.b16 %v2115, %v2099
  %v2212 = vpack.c.b16 %v2116, %v2100
  %v2213 = vpack.c.b16 %v2117, %v2101
  %v2214 = vpack.c.b16 %v2118, %v2102
  %v2215 = vpack.c.b16 %v2119, %v2103
  %v2216 = vpack.c.b16 %v2120, %v2104
  %v2217 = vpack.c.b16 %v2121, %v2105
  %v2218 = vpack.c.b16 %v2122, %v2106
  %v2219 = vpack.c.b16 %v2123, %v2107
  %v2220 = vpack.c.b16 %v2124, %v2124
  %v2221 = vpack.c.b16 %v2125, %v2125
  %v2222 = vpack.c.b16 %v2126, %v2126
  %v2223 = vpack.c.b16 %v2127, %v2127
  %v2224 = vpack.c.b16 %v2128, %v2128
  %v2225 = vpack.c.b16 %v2129, %v2129
  %v2226 = vpack.c.b16 %v2130, %v2130
  %v2227 = vpack.c.b16 %v2131, %v2131
  %v2228 = vpack.c.b16 %v2132, %v2132
  %v2229 = vpack.c.b16 %v2133, %v2133
  %v2230 = vpack.c.b16 %v2134, %v2134
  %v2231 = vpack.c.b16 %v2135, %v2135
  %v2232 = vpack.c.b16 %v2136, %v2136
  %v2233 = vpack.c.b16 %v2137, %v2137
  %v2234 = vpack.c.b16 %v2138, %v2138
  %v2235 = vpack.c.b16 %v2139, %v2139
  %v2317 = vand.u32 %v2220, %v558
  %v2320 = vand.u32 %v2221, %v558
  %v2323 = vand.u32 %v2222, %v558
  %v2326 = vand.u32 %v2223, %v558
  %v2329 = vand.u32 %v2224, %v558
  %v2332 = vand.u32 %v2225, %v558
  %v2335 = vand.u32 %v2226, %v558
  %v2338 = vand.u32 %v2227, %v558
  %v2341 = vand.u32 %v2228, %v558
  %v2344 = vand.u32 %v2229, %v558
  %v2347 = vand.u32 %v2230, %v558
  %v2350 = vand.u32 %v2231, %v558
  %v2353 = vand.u32 %v2232, %v558
  %v2356 = vand.u32 %v2233, %v558
  %v2359 = vand.u32 %v2234, %v558
  %v2362 = vand.u32 %v2235, %v558
  %2364 = vmatprep.subr.bf16.mxu0 %v2141
  %2365 = vmatpush1.bf16.msra.mxu0 %v2140
  %2366 = vmatprep.subr.bf16.mxu0 %v2157
  %2367 = vmatpush1.bf16.msra.mxu0 %v2156
  %2368 = vmatprep.subr.bf16.mxu0 %v2173
  %2369 = vmatpush1.bf16.msra.mxu0 %v2172
  %2370 = vmatprep.subr.bf16.mxu0 %v2189
  %2371 = vmatpush1.bf16.msra.mxu0 %v2188
  %2372 = vmatprep.subr.bf16.mxu0 %v2205
  %2373 = vmatpush1.bf16.msra.mxu0 %v2204
  %2374 = vmatprep.subr.bf16.mxu0 %v2320
  %2375 = vmatpush1.bf16.msra.mxu0 %v2317
  %2376 = vmatprep.subr.bf16.mxu0 0
  %2377 = vmatpush1.bf16.msra.mxu0 0
  %2378 = vmatprep.subr.bf16.mxu0 0
  %2379 = vmatpush1.bf16.msra.mxu0 0
  %2380 = vmatprep.subr.bf16.mxu0 0
  %2381 = vmatpush1.bf16.msra.mxu0 0
  %2382 = vmatprep.subr.bf16.mxu0 0
  %2383 = vmatpush1.bf16.msra.mxu0 0
  %2384 = vmatprep.subr.bf16.mxu0 0
  %2385 = vmatpush1.bf16.msra.mxu0 0
  %2386 = vmatprep.subr.bf16.mxu0 0
  %2387 = vmatpush1.bf16.msra.mxu0 0
  %2388 = vmatprep.subr.bf16.mxu0 0
  %2389 = vmatpush1.bf16.msra.mxu0 0
  %2390 = vmatprep.subr.bf16.mxu0 0
  %2391 = vmatpush1.bf16.msra.mxu0 0
  %2392 = vmatprep.subr.bf16.mxu0 0
  %2393 = vmatpush1.bf16.msra.mxu0 0
  %2394 = vmatprep.subr.bf16.mxu0 0
  %2395 = vmatpush1.bf16.msra.mxu0 0
  %2396 = vmatprep.mubr.bf16.mxu0 0
  %2397 = vmatmul.mubr.bf16.gmra.mrb[0].mxu0 %v554
  %v2398 = vpop.f32.mrb[0].mxu0
  %v2399 = vadd.f32 0.0, %v2398
  %v2400 = vpop.f32.mrb[0].mxu0
  %v2401 = vadd.f32 0.0, %v2400
  %v2402 = vpop.f32.mrb[0].mxu0
  %v2403 = vadd.f32 0.0, %v2402
  %v2404 = vpop.f32.mrb[0].mxu0
  %v2405 = vadd.f32 0.0, %v2404
  %2406 = vdwg.mxu0
  %2407 = vmatprep.subr.bf16.mxu0 %v2143
  %2408 = vmatpush1.bf16.msra.mxu0 %v2142
  %2409 = vmatprep.subr.bf16.mxu0 %v2159
  %2410 = vmatpush1.bf16.msra.mxu0 %v2158
  %2411 = vmatprep.subr.bf16.mxu0 %v2175
  %2412 = vmatpush1.bf16.msra.mxu0 %v2174
  %2413 = vmatprep.subr.bf16.mxu0 %v2191
  %2414 = vmatpush1.bf16.msra.mxu0 %v2190
  %2415 = vmatprep.subr.bf16.mxu0 %v2207
  %2416 = vmatpush1.bf16.msra.mxu0 %v2206
  %2417 = vmatprep.subr.bf16.mxu0 %v2326
  %2418 = vmatpush1.bf16.msra.mxu0 %v2323
  %2419 = vmatprep.subr.bf16.mxu0 0
  %2420 = vmatpush1.bf16.msra.mxu0 0
  %2421 = vmatprep.subr.bf16.mxu0 0
  %2422 = vmatpush1.bf16.msra.mxu0 0
  %2423 = vmatprep.subr.bf16.mxu0 0
  %2424 = vmatpush1.bf16.msra.mxu0 0
  %2425 = vmatprep.subr.bf16.mxu0 0
  %2426 = vmatpush1.bf16.msra.mxu0 0
  %2427 = vmatprep.subr.bf16.mxu0 0
  %2428 = vmatpush1.bf16.msra.mxu0 0
  %2429 = vmatprep.subr.bf16.mxu0 0
  %2430 = vmatpush1.bf16.msra.mxu0 0
  %2431 = vmatprep.subr.bf16.mxu0 0
  %2432 = vmatpush1.bf16.msra.mxu0 0
  %2433 = vmatprep.subr.bf16.mxu0 0
  %2434 = vmatpush1.bf16.msra.mxu0 0
  %2435 = vmatprep.subr.bf16.mxu0 0
  %2436 = vmatpush1.bf16.msra.mxu0 0
  %2437 = vmatprep.subr.bf16.mxu0 0
  %2438 = vmatpush1.bf16.msra.mxu0 0
  %2439 = vmatprep.mubr.bf16.mxu0 0
  %2440 = vmatmul.mubr.bf16.gmra.mrb[0].mxu0 %v554
  %v2441 = vpop.f32.mrb[0].mxu0
  %v2442 = vadd.f32 0.0, %v2441
  %v2443 = vpop.f32.mrb[0].mxu0
  %v2444 = vadd.f32 0.0, %v2443
  %v2445 = vpop.f32.mrb[0].mxu0
  %v2446 = vadd.f32 0.0, %v2445
  %v2447 = vpop.f32.mrb[0].mxu0
  %v2448 = vadd.f32 0.0, %v2447
  %2449 = vdwg.mxu0
  %2450 = vmatprep.subr.bf16.mxu0 %v2145
  %2451 = vmatpush1.bf16.msra.mxu0 %v2144
  %2452 = vmatprep.subr.bf16.mxu0 %v2161
  %2453 = vmatpush1.bf16.msra.mxu0 %v2160
  %2454 = vmatprep.subr.bf16.mxu0 %v2177
  %2455 = vmatpush1.bf16.msra.mxu0 %v2176
  %2456 = vmatprep.subr.bf16.mxu0 %v2193
  %2457 = vmatpush1.bf16.msra.mxu0 %v2192
  %2458 = vmatprep.subr.bf16.mxu0 %v2209
  %2459 = vmatpush1.bf16.msra.mxu0 %v2208
  %2460 = vmatprep.subr.bf16.mxu0 %v2332
  %2461 = vmatpush1.bf16.msra.mxu0 %v2329
  %2462 = vmatprep.subr.bf16.mxu0 0
  %2463 = vmatpush1.bf16.msra.mxu0 0
  %2464 = vmatprep.subr.bf16.mxu0 0
  %2465 = vmatpush1.bf16.msra.mxu0 0
  %2466 = vmatprep.subr.bf16.mxu0 0
  %2467 = vmatpush1.bf16.msra.mxu0 0
  %2468 = vmatprep.subr.bf16.mxu0 0
  %2469 = vmatpush1.bf16.msra.mxu0 0
  %2470 = vmatprep.subr.bf16.mxu0 0
  %2471 = vmatpush1.bf16.msra.mxu0 0
  %2472 = vmatprep.subr.bf16.mxu0 0
  %2473 = vmatpush1.bf16.msra.mxu0 0
  %2474 = vmatprep.subr.bf16.mxu0 0
  %2475 = vmatpush1.bf16.msra.mxu0 0
  %2476 = vmatprep.subr.bf16.mxu0 0
  %2477 = vmatpush1.bf16.msra.mxu0 0
  %2478 = vmatprep.subr.bf16.mxu0 0
  %2479 = vmatpush1.bf16.msra.mxu0 0
  %2480 = vmatprep.subr.bf16.mxu0 0
  %2481 = vmatpush1.bf16.msra.mxu0 0
  %2482 = vmatprep.mubr.bf16.mxu0 0
  %2483 = vmatmul.mubr.bf16.gmra.mrb[0].mxu0 %v554
  %v2484 = vpop.f32.mrb[0].mxu0
  %v2485 = vadd.f32 0.0, %v2484
  %v2486 = vpop.f32.mrb[0].mxu0
  %v2487 = vadd.f32 0.0, %v2486
  %v2488 = vpop.f32.mrb[0].mxu0
  %v2489 = vadd.f32 0.0, %v2488
  %v2490 = vpop.f32.mrb[0].mxu0
  %v2491 = vadd.f32 0.0, %v2490
  %2492 = vdwg.mxu0
  %2493 = vmatprep.subr.bf16.mxu0 %v2147
  %2494 = vmatpush1.bf16.msra.mxu0 %v2146
  %2495 = vmatprep.subr.bf16.mxu0 %v2163
  %2496 = vmatpush1.bf16.msra.mxu0 %v2162
  %2497 = vmatprep.subr.bf16.mxu0 %v2179
  %2498 = vmatpush1.bf16.msra.mxu0 %v2178
  %2499 = vmatprep.subr.bf16.mxu0 %v2195
  %2500 = vmatpush1.bf16.msra.mxu0 %v2194
  %2501 = vmatprep.subr.bf16.mxu0 %v2211
  %2502 = vmatpush1.bf16.msra.mxu0 %v2210
  %2503 = vmatprep.subr.bf16.mxu0 %v2338
  %2504 = vmatpush1.bf16.msra.mxu0 %v2335
  %2505 = vmatprep.subr.bf16.mxu0 0
  %2506 = vmatpush1.bf16.msra.mxu0 0
  %2507 = vmatprep.subr.bf16.mxu0 0
  %2508 = vmatpush1.bf16.msra.mxu0 0
  %2509 = vmatprep.subr.bf16.mxu0 0
  %2510 = vmatpush1.bf16.msra.mxu0 0
  %2511 = vmatprep.subr.bf16.mxu0 0
  %2512 = vmatpush1.bf16.msra.mxu0 0
  %2513 = vmatprep.subr.bf16.mxu0 0
  %2514 = vmatpush1.bf16.msra.mxu0 0
  %2515 = vmatprep.subr.bf16.mxu0 0
  %2516 = vmatpush1.bf16.msra.mxu0 0
  %2517 = vmatprep.subr.bf16.mxu0 0
  %2518 = vmatpush1.bf16.msra.mxu0 0
  %2519 = vmatprep.subr.bf16.mxu0 0
  %2520 = vmatpush1.bf16.msra.mxu0 0
  %2521 = vmatprep.subr.bf16.mxu0 0
  %2522 = vmatpush1.bf16.msra.mxu0 0
  %2523 = vmatprep.subr.bf16.mxu0 0
  %2524 = vmatpush1.bf16.msra.mxu0 0
  %2525 = vmatprep.mubr.bf16.mxu0 0
  %2526 = vmatmul.mubr.bf16.gmra.mrb[0].mxu0 %v554
  %v2527 = vpop.f32.mrb[0].mxu0
  %v2528 = vadd.f32 0.0, %v2527
  %v2529 = vpop.f32.mrb[0].mxu0
  %v2530 = vadd.f32 0.0, %v2529
  %v2531 = vpop.f32.mrb[0].mxu0
  %v2532 = vadd.f32 0.0, %v2531
  %v2533 = vpop.f32.mrb[0].mxu0
  %v2534 = vadd.f32 0.0, %v2533
  %2535 = vdwg.mxu0
  %2536 = vmatprep.subr.bf16.mxu0 %v2149
  %2537 = vmatpush1.bf16.msra.mxu0 %v2148
  %2538 = vmatprep.subr.bf16.mxu0 %v2165
  %2539 = vmatpush1.bf16.msra.mxu0 %v2164
  %2540 = vmatprep.subr.bf16.mxu0 %v2181
  %2541 = vmatpush1.bf16.msra.mxu0 %v2180
  %2542 = vmatprep.subr.bf16.mxu0 %v2197
  %2543 = vmatpush1.bf16.msra.mxu0 %v2196
  %2544 = vmatprep.subr.bf16.mxu0 %v2213
  %2545 = vmatpush1.bf16.msra.mxu0 %v2212
  %2546 = vmatprep.subr.bf16.mxu0 %v2344
  %2547 = vmatpush1.bf16.msra.mxu0 %v2341
  %2548 = vmatprep.subr.bf16.mxu0 0
  %2549 = vmatpush1.bf16.msra.mxu0 0
  %2550 = vmatprep.subr.bf16.mxu0 0
  %2551 = vmatpush1.bf16.msra.mxu0 0
  %2552 = vmatprep.subr.bf16.mxu0 0
  %2553 = vmatpush1.bf16.msra.mxu0 0
  %2554 = vmatprep.subr.bf16.mxu0 0
  %2555 = vmatpush1.bf16.msra.mxu0 0
  %2556 = vmatprep.subr.bf16.mxu0 0
  %2557 = vmatpush1.bf16.msra.mxu0 0
  %2558 = vmatprep.subr.bf16.mxu0 0
  %2559 = vmatpush1.bf16.msra.mxu0 0
  %2560 = vmatprep.subr.bf16.mxu0 0
  %2561 = vmatpush1.bf16.msra.mxu0 0
  %2562 = vmatprep.subr.bf16.mxu0 0
  %2563 = vmatpush1.bf16.msra.mxu0 0
  %2564 = vmatprep.subr.bf16.mxu0 0
  %2565 = vmatpush1.bf16.msra.mxu0 0
  %2566 = vmatprep.subr.bf16.mxu0 0
  %2567 = vmatpush1.bf16.msra.mxu0 0
  %2568 = vmatprep.mubr.bf16.mxu0 0
  %2569 = vmatmul.mubr.bf16.gmra.mrb[0].mxu0 %v554
  %v2570 = vpop.f32.mrb[0].mxu0
  %v2571 = vadd.f32 0.0, %v2570
  %v2572 = vpop.f32.mrb[0].mxu0
  %v2573 = vadd.f32 0.0, %v2572
  %v2574 = vpop.f32.mrb[0].mxu0
  %v2575 = vadd.f32 0.0, %v2574
  %v2576 = vpop.f32.mrb[0].mxu0
  %v2577 = vadd.f32 0.0, %v2576
  %2578 = vdwg.mxu0
  %2579 = vmatprep.subr.bf16.mxu0 %v2151
  %2580 = vmatpush1.bf16.msra.mxu0 %v2150
  %2581 = vmatprep.subr.bf16.mxu0 %v2167
  %2582 = vmatpush1.bf16.msra.mxu0 %v2166
  %2583 = vmatprep.subr.bf16.mxu0 %v2183
  %2584 = vmatpush1.bf16.msra.mxu0 %v2182
  %2585 = vmatprep.subr.bf16.mxu0 %v2199
  %2586 = vmatpush1.bf16.msra.mxu0 %v2198
  %2587 = vmatprep.subr.bf16.mxu0 %v2215
  %2588 = vmatpush1.bf16.msra.mxu0 %v2214
  %2589 = vmatprep.subr.bf16.mxu0 %v2350
  %2590 = vmatpush1.bf16.msra.mxu0 %v2347
  %2591 = vmatprep.subr.bf16.mxu0 0
  %2592 = vmatpush1.bf16.msra.mxu0 0
  %2593 = vmatprep.subr.bf16.mxu0 0
  %2594 = vmatpush1.bf16.msra.mxu0 0
  %2595 = vmatprep.subr.bf16.mxu0 0
  %2596 = vmatpush1.bf16.msra.mxu0 0
  %2597 = vmatprep.subr.bf16.mxu0 0
  %2598 = vmatpush1.bf16.msra.mxu0 0
  %2599 = vmatprep.subr.bf16.mxu0 0
  %2600 = vmatpush1.bf16.msra.mxu0 0
  %2601 = vmatprep.subr.bf16.mxu0 0
  %2602 = vmatpush1.bf16.msra.mxu0 0
  %2603 = vmatprep.subr.bf16.mxu0 0
  %2604 = vmatpush1.bf16.msra.mxu0 0
  %2605 = vmatprep.subr.bf16.mxu0 0
  %2606 = vmatpush1.bf16.msra.mxu0 0
  %2607 = vmatprep.subr.bf16.mxu0 0
  %2608 = vmatpush1.bf16.msra.mxu0 0
  %2609 = vmatprep.subr.bf16.mxu0 0
  %2610 = vmatpush1.bf16.msra.mxu0 0
  %2611 = vmatprep.mubr.bf16.mxu0 0
  %2612 = vmatmul.mubr.bf16.gmra.mrb[0].mxu0 %v554
  %v2613 = vpop.f32.mrb[0].mxu0
  %v2614 = vadd.f32 0.0, %v2613
  %v2615 = vpop.f32.mrb[0].mxu0
  %v2616 = vadd.f32 0.0, %v2615
  %v2617 = vpop.f32.mrb[0].mxu0
  %v2618 = vadd.f32 0.0, %v2617
  %v2619 = vpop.f32.mrb[0].mxu0
  %v2620 = vadd.f32 0.0, %v2619
  %2621 = vdwg.mxu0
  %2622 = vmatprep.subr.bf16.mxu0 %v2153
  %2623 = vmatpush1.bf16.msra.mxu0 %v2152
  %2624 = vmatprep.subr.bf16.mxu0 %v2169
  %2625 = vmatpush1.bf16.msra.mxu0 %v2168
  %2626 = vmatprep.subr.bf16.mxu0 %v2185
  %2627 = vmatpush1.bf16.msra.mxu0 %v2184
  %2628 = vmatprep.subr.bf16.mxu0 %v2201
  %2629 = vmatpush1.bf16.msra.mxu0 %v2200
  %2630 = vmatprep.subr.bf16.mxu0 %v2217
  %2631 = vmatpush1.bf16.msra.mxu0 %v2216
  %2632 = vmatprep.subr.bf16.mxu0 %v2356
  %2633 = vmatpush1.bf16.msra.mxu0 %v2353
  %2634 = vmatprep.subr.bf16.mxu0 0
  %2635 = vmatpush1.bf16.msra.mxu0 0
  %2636 = vmatprep.subr.bf16.mxu0 0
  %2637 = vmatpush1.bf16.msra.mxu0 0
  %2638 = vmatprep.subr.bf16.mxu0 0
  %2639 = vmatpush1.bf16.msra.mxu0 0
  %2640 = vmatprep.subr.bf16.mxu0 0
  %2641 = vmatpush1.bf16.msra.mxu0 0
  %2642 = vmatprep.subr.bf16.mxu0 0
  %2643 = vmatpush1.bf16.msra.mxu0 0
  %2644 = vmatprep.subr.bf16.mxu0 0
  %2645 = vmatpush1.bf16.msra.mxu0 0
  %2646 = vmatprep.subr.bf16.mxu0 0
  %2647 = vmatpush1.bf16.msra.mxu0 0
  %2648 = vmatprep.subr.bf16.mxu0 0
  %2649 = vmatpush1.bf16.msra.mxu0 0
  %2650 = vmatprep.subr.bf16.mxu0 0
  %2651 = vmatpush1.bf16.msra.mxu0 0
  %2652 = vmatprep.subr.bf16.mxu0 0
  %2653 = vmatpush1.bf16.msra.mxu0 0
  %2654 = vmatprep.mubr.bf16.mxu0 0
  %2655 = vmatmul.mubr.bf16.gmra.mrb[0].mxu0 %v554
  %v2656 = vpop.f32.mrb[0].mxu0
  %v2657 = vadd.f32 0.0, %v2656
  %v2658 = vpop.f32.mrb[0].mxu0
  %v2659 = vadd.f32 0.0, %v2658
  %v2660 = vpop.f32.mrb[0].mxu0
  %v2661 = vadd.f32 0.0, %v2660
  %v2662 = vpop.f32.mrb[0].mxu0
  %v2663 = vadd.f32 0.0, %v2662
  %2664 = vdwg.mxu0
  %2665 = vmatprep.subr.bf16.mxu0 %v2155
  %2666 = vmatpush1.bf16.msra.mxu0 %v2154
  %2667 = vmatprep.subr.bf16.mxu0 %v2171
  %2668 = vmatpush1.bf16.msra.mxu0 %v2170
  %2669 = vmatprep.subr.bf16.mxu0 %v2187
  %2670 = vmatpush1.bf16.msra.mxu0 %v2186
  %2671 = vmatprep.subr.bf16.mxu0 %v2203
  %2672 = vmatpush1.bf16.msra.mxu0 %v2202
  %2673 = vmatprep.subr.bf16.mxu0 %v2219
  %2674 = vmatpush1.bf16.msra.mxu0 %v2218
  %2675 = vmatprep.subr.bf16.mxu0 %v2362
  %2676 = vmatpush1.bf16.msra.mxu0 %v2359
  %2677 = vmatprep.subr.bf16.mxu0 0
  %2678 = vmatpush1.bf16.msra.mxu0 0
  %2679 = vmatprep.subr.bf16.mxu0 0
  %2680 = vmatpush1.bf16.msra.mxu0 0
  %2681 = vmatprep.subr.bf16.mxu0 0
  %2682 = vmatpush1.bf16.msra.mxu0 0
  %2683 = vmatprep.subr.bf16.mxu0 0
  %2684 = vmatpush1.bf16.msra.mxu0 0
  %2685 = vmatprep.subr.bf16.mxu0 0
  %2686 = vmatpush1.bf16.msra.mxu0 0
  %2687 = vmatprep.subr.bf16.mxu0 0
  %2688 = vmatpush1.bf16.msra.mxu0 0
  %2689 = vmatprep.subr.bf16.mxu0 0
  %2690 = vmatpush1.bf16.msra.mxu0 0
  %2691 = vmatprep.subr.bf16.mxu0 0
  %2692 = vmatpush1.bf16.msra.mxu0 0
  %2693 = vmatprep.subr.bf16.mxu0 0
  %2694 = vmatpush1.bf16.msra.mxu0 0
  %2695 = vmatprep.subr.bf16.mxu0 0
  %2696 = vmatpush1.bf16.msra.mxu0 0
  %2697 = vmatprep.mubr.bf16.mxu0 0
  %2698 = vmatmul.mubr.bf16.gmra.mrb[0].mxu0 %v554
  %v2699 = vpop.f32.mrb[0].mxu0
  %v2700 = vadd.f32 0.0, %v2699
  %v2701 = vpop.f32.mrb[0].mxu0
  %v2702 = vadd.f32 0.0, %v2701
  %v2703 = vpop.f32.mrb[0].mxu0
  %v2704 = vadd.f32 0.0, %v2703
  %v2705 = vpop.f32.mrb[0].mxu0
  %v2706 = vadd.f32 0.0, %v2705
  %2707 = vdwg.mxu0
  %2708 = vrot.lane.b32.xlu0 %v2399, 127
  %v2709 = vpop.permute.xlu0 %2708
  %2710 = vrot.lane.b32.xlu0 %v2403, 127
  %v2711 = vpop.permute.xlu0 %2710
  %2712 = vrot.lane.b32.xlu0 %v2401, 127
  %v2713 = vpop.permute.xlu0 %2712
  %2714 = vrot.lane.b32.xlu0 %v2405, 127
  %v2715 = vpop.permute.xlu0 %2714
  %2716 = vrot.lane.b32.xlu0 %v2442, 127
  %v2717 = vpop.permute.xlu0 %2716
  %2718 = vrot.lane.b32.xlu0 %v2446, 127
  %v2719 = vpop.permute.xlu0 %2718
  %2720 = vrot.lane.b32.xlu0 %v2444, 127
  %v2721 = vpop.permute.xlu0 %2720
  %2722 = vrot.lane.b32.xlu0 %v2448, 127
  %v2723 = vpop.permute.xlu0 %2722
  %2724 = vrot.lane.b32.xlu0 %v2485, 127
  %v2725 = vpop.permute.xlu0 %2724
  %2726 = vrot.lane.b32.xlu0 %v2489, 127
  %v2727 = vpop.permute.xlu0 %2726
  %2728 = vrot.lane.b32.xlu0 %v2487, 127
  %v2729 = vpop.permute.xlu0 %2728
  %2730 = vrot.lane.b32.xlu0 %v2491, 127
  %v2731 = vpop.permute.xlu0 %2730
  %2732 = vrot.lane.b32.xlu0 %v2528, 127
  %v2733 = vpop.permute.xlu0 %2732
  %2734 = vrot.lane.b32.xlu0 %v2532, 127
  %v2735 = vpop.permute.xlu0 %2734
  %2736 = vrot.lane.b32.xlu0 %v2530, 127
  %v2737 = vpop.permute.xlu0 %2736
  %2738 = vrot.lane.b32.xlu0 %v2534, 127
  %v2739 = vpop.permute.xlu0 %2738
  %2740 = vrot.lane.b32.xlu0 %v2571, 127
  %v2741 = vpop.permute.xlu0 %2740
  %2742 = vrot.lane.b32.xlu0 %v2575, 127
  %v2743 = vpop.permute.xlu0 %2742
  %2744 = vrot.lane.b32.xlu0 %v2573, 127
  %v2745 = vpop.permute.xlu0 %2744
  %2746 = vrot.lane.b32.xlu0 %v2577, 127
  %v2747 = vpop.permute.xlu0 %2746
  %2748 = vrot.lane.b32.xlu0 %v2614, 127
  %v2749 = vpop.permute.xlu0 %2748
  %2750 = vrot.lane.b32.xlu0 %v2618, 127
  %v2751 = vpop.permute.xlu0 %2750
  %2752 = vrot.lane.b32.xlu0 %v2616, 127
  %v2753 = vpop.permute.xlu0 %2752
  %2754 = vrot.lane.b32.xlu0 %v2620, 127
  %v2755 = vpop.permute.xlu0 %2754
  %2756 = vrot.lane.b32.xlu0 %v2657, 127
  %v2757 = vpop.permute.xlu0 %2756
  %2758 = vrot.lane.b32.xlu0 %v2661, 127
  %v2759 = vpop.permute.xlu0 %2758
  %2760 = vrot.lane.b32.xlu0 %v2659, 127
  %v2761 = vpop.permute.xlu0 %2760
  %2762 = vrot.lane.b32.xlu0 %v2663, 127
  %v2763 = vpop.permute.xlu0 %2762
  %2764 = vrot.lane.b32.xlu0 %v2700, 127
  %v2765 = vpop.permute.xlu0 %2764
  %2766 = vrot.lane.b32.xlu0 %v2704, 127
  %v2767 = vpop.permute.xlu0 %2766
  %2768 = vrot.lane.b32.xlu0 %v2702, 127
  %v2769 = vpop.permute.xlu0 %2768
  %2770 = vrot.lane.b32.xlu0 %v2706, 127
  %v2771 = vpop.permute.xlu0 %2770
  %v2772 = vsel %vm1017, %v2765, %v2769
  %v2773 = vsel %vm1017, %v2767, %v2771
  %v2774 = vsel %vm1017, %v2761, %v2765
  %v2775 = vsel %vm1017, %v2763, %v2767
  %v2776 = vsel %vm1017, %v2757, %v2761
  %v2777 = vsel %vm1017, %v2759, %v2763
  %v2778 = vsel %vm1017, %v2753, %v2757
  %v2779 = vsel %vm1017, %v2755, %v2759
  %v2780 = vsel %vm1017, %v2749, %v2753
  %v2781 = vsel %vm1017, %v2751, %v2755
  %v2782 = vsel %vm1017, %v2745, %v2749
  %v2783 = vsel %vm1017, %v2747, %v2751
  %v2784 = vsel %vm1017, %v2741, %v2745
  %v2785 = vsel %vm1017, %v2743, %v2747
  %v2786 = vsel %vm1017, %v2737, %v2741
  %v2787 = vsel %vm1017, %v2739, %v2743
  %v2788 = vsel %vm1017, %v2733, %v2737
  %v2789 = vsel %vm1017, %v2735, %v2739
  %v2790 = vsel %vm1017, %v2729, %v2733
  %v2791 = vsel %vm1017, %v2731, %v2735
  %v2792 = vsel %vm1017, %v2725, %v2729
  %v2793 = vsel %vm1017, %v2727, %v2731
  %v2794 = vsel %vm1017, %v2721, %v2725
  %v2795 = vsel %vm1017, %v2723, %v2727
  %v2796 = vsel %vm1017, %v2717, %v2721
  %v2797 = vsel %vm1017, %v2719, %v2723
  %v2798 = vsel %vm1017, %v2713, %v2717
  %v2799 = vsel %vm1017, %v2715, %v2719
  %v2800 = vsel %vm1017, %v2709, %v2713
  %v2801 = vsel %vm1017, %v2711, %v2715
  %v2802 = vsel %vm1017, %v2769, %v2709
  %v2803 = vsel %vm1017, %v2771, %v2711
  %v2804 = vmax.f32 %v2399, %v2800
  %v2805 = vmax.f32 %v2401, %v2798
  %v2806 = vmax.f32 %v2442, %v2796
  %v2807 = vmax.f32 %v2444, %v2794
  %v2808 = vmax.f32 %v2485, %v2792
  %v2809 = vmax.f32 %v2487, %v2790
  %v2810 = vmax.f32 %v2528, %v2788
  %v2811 = vmax.f32 %v2530, %v2786
  %v2812 = vmax.f32 %v2571, %v2784
  %v2813 = vmax.f32 %v2573, %v2782
  %v2814 = vmax.f32 %v2614, %v2780
  %v2815 = vmax.f32 %v2616, %v2778
  %v2816 = vmax.f32 %v2657, %v2776
  %v2817 = vmax.f32 %v2659, %v2774
  %v2818 = vmax.f32 %v2700, %v2772
  %v2819 = vmax.f32 %v2702, %v2802
  %v2820 = vmax.f32 %v2403, %v2801
  %v2821 = vmax.f32 %v2405, %v2799
  %v2822 = vmax.f32 %v2446, %v2797
  %v2823 = vmax.f32 %v2448, %v2795
  %v2824 = vmax.f32 %v2489, %v2793
  %v2825 = vmax.f32 %v2491, %v2791
  %v2826 = vmax.f32 %v2532, %v2789
  %v2827 = vmax.f32 %v2534, %v2787
  %v2828 = vmax.f32 %v2575, %v2785
  %v2829 = vmax.f32 %v2577, %v2783
  %v2830 = vmax.f32 %v2618, %v2781
  %v2831 = vmax.f32 %v2620, %v2779
  %v2832 = vmax.f32 %v2661, %v2777
  %v2833 = vmax.f32 %v2663, %v2775
  %v2834 = vmax.f32 %v2704, %v2773
  %v2835 = vmax.f32 %v2706, %v2803
  %2836 = vrot.lane.b32.xlu0 %v2804, 112
  %v2837 = vpop.permute.xlu0 %2836
  %2838 = vrot.lane.b32.xlu0 %v2820, 112
  %v2839 = vpop.permute.xlu0 %2838
  %2840 = vrot.lane.b32.xlu0 %v2805, 112
  %v2841 = vpop.permute.xlu0 %2840
  %2842 = vrot.lane.b32.xlu0 %v2821, 112
  %v2843 = vpop.permute.xlu0 %2842
  %2844 = vrot.lane.b32.xlu0 %v2806, 112
  %v2845 = vpop.permute.xlu0 %2844
  %2846 = vrot.lane.b32.xlu0 %v2822, 112
  %v2847 = vpop.permute.xlu0 %2846
  %2848 = vrot.lane.b32.xlu0 %v2807, 112
  %v2849 = vpop.permute.xlu0 %2848
  %2850 = vrot.lane.b32.xlu0 %v2823, 112
  %v2851 = vpop.permute.xlu0 %2850
  %2852 = vrot.lane.b32.xlu0 %v2808, 112
  %v2853 = vpop.permute.xlu0 %2852
  %2854 = vrot.lane.b32.xlu0 %v2824, 112
  %v2855 = vpop.permute.xlu0 %2854
  %2856 = vrot.lane.b32.xlu0 %v2809, 112
  %v2857 = vpop.permute.xlu0 %2856
  %2858 = vrot.lane.b32.xlu0 %v2825, 112
  %v2859 = vpop.permute.xlu0 %2858
  %2860 = vrot.lane.b32.xlu0 %v2810, 112
  %v2861 = vpop.permute.xlu0 %2860
  %2862 = vrot.lane.b32.xlu0 %v2826, 112
  %v2863 = vpop.permute.xlu0 %2862
  %2864 = vrot.lane.b32.xlu0 %v2811, 112
  %v2865 = vpop.permute.xlu0 %2864
  %2866 = vrot.lane.b32.xlu0 %v2827, 112
  %v2867 = vpop.permute.xlu0 %2866
  %2868 = vrot.lane.b32.xlu0 %v2812, 112
  %v2869 = vpop.permute.xlu0 %2868
  %2870 = vrot.lane.b32.xlu0 %v2828, 112
  %v2871 = vpop.permute.xlu0 %2870
  %2872 = vrot.lane.b32.xlu0 %v2813, 112
  %v2873 = vpop.permute.xlu0 %2872
  %2874 = vrot.lane.b32.xlu0 %v2829, 112
  %v2875 = vpop.permute.xlu0 %2874
  %2876 = vrot.lane.b32.xlu0 %v2814, 112
  %v2877 = vpop.permute.xlu0 %2876
  %2878 = vrot.lane.b32.xlu0 %v2830, 112
  %v2879 = vpop.permute.xlu0 %2878
  %2880 = vrot.lane.b32.xlu0 %v2815, 112
  %v2881 = vpop.permute.xlu0 %2880
  %2882 = vrot.lane.b32.xlu0 %v2831, 112
  %v2883 = vpop.permute.xlu0 %2882
  %2884 = vrot.lane.b32.xlu0 %v2816, 112
  %v2885 = vpop.permute.xlu0 %2884
  %2886 = vrot.lane.b32.xlu0 %v2832, 112
  %v2887 = vpop.permute.xlu0 %2886
  %2888 = vrot.lane.b32.xlu0 %v2817, 112
  %v2889 = vpop.permute.xlu0 %2888
  %2890 = vrot.lane.b32.xlu0 %v2833, 112
  %v2891 = vpop.permute.xlu0 %2890
  %2892 = vrot.lane.b32.xlu0 %v2818, 112
  %v2893 = vpop.permute.xlu0 %2892
  %2894 = vrot.lane.b32.xlu0 %v2834, 112
  %v2895 = vpop.permute.xlu0 %2894
  %2896 = vrot.lane.b32.xlu0 %v2819, 112
  %v2897 = vpop.permute.xlu0 %2896
  %2898 = vrot.lane.b32.xlu0 %v2835, 112
  %v2899 = vpop.permute.xlu0 %2898
  %v2900 = vsel %vm1146, %v2893, %v2897
  %v2901 = vsel %vm1146, %v2895, %v2899
  %v2902 = vsel %vm1146, %v2889, %v2893
  %v2903 = vsel %vm1146, %v2891, %v2895
  %v2904 = vsel %vm1146, %v2885, %v2889
  %v2905 = vsel %vm1146, %v2887, %v2891
  %v2906 = vsel %vm1146, %v2881, %v2885
  %v2907 = vsel %vm1146, %v2883, %v2887
  %v2908 = vsel %vm1146, %v2877, %v2881
  %v2909 = vsel %vm1146, %v2879, %v2883
  %v2910 = vsel %vm1146, %v2873, %v2877
  %v2911 = vsel %vm1146, %v2875, %v2879
  %v2912 = vsel %vm1146, %v2869, %v2873
  %v2913 = vsel %vm1146, %v2871, %v2875
  %v2914 = vsel %vm1146, %v2865, %v2869
  %v2915 = vsel %vm1146, %v2867, %v2871
  %v2916 = vsel %vm1146, %v2861, %v2865
  %v2917 = vsel %vm1146, %v2863, %v2867
  %v2918 = vsel %vm1146, %v2857, %v2861
  %v2919 = vsel %vm1146, %v2859, %v2863
  %v2920 = vsel %vm1146, %v2853, %v2857
  %v2921 = vsel %vm1146, %v2855, %v2859
  %v2922 = vsel %vm1146, %v2849, %v2853
  %v2923 = vsel %vm1146, %v2851, %v2855
  %v2924 = vsel %vm1146, %v2845, %v2849
  %v2925 = vsel %vm1146, %v2847, %v2851
  %v2926 = vsel %vm1146, %v2841, %v2845
  %v2927 = vsel %vm1146, %v2843, %v2847
  %v2928 = vsel %vm1146, %v2837, %v2841
  %v2929 = vsel %vm1146, %v2839, %v2843
  %v2930 = vsel %vm1146, %v2897, %v2837
  %v2931 = vsel %vm1146, %v2899, %v2839
  %v2932 = vmax.f32 %v2804, %v2928
  %v2933 = vmax.f32 %v2805, %v2926
  %v2934 = vmax.f32 %v2806, %v2924
  %v2935 = vmax.f32 %v2807, %v2922
  %v2936 = vmax.f32 %v2808, %v2920
  %v2937 = vmax.f32 %v2809, %v2918
  %v2938 = vmax.f32 %v2810, %v2916
  %v2939 = vmax.f32 %v2811, %v2914
  %v2940 = vmax.f32 %v2812, %v2912
  %v2941 = vmax.f32 %v2813, %v2910
  %v2942 = vmax.f32 %v2814, %v2908
  %v2943 = vmax.f32 %v2815, %v2906
  %v2944 = vmax.f32 %v2816, %v2904
  %v2945 = vmax.f32 %v2817, %v2902
  %v2946 = vmax.f32 %v2818, %v2900
  %v2947 = vmax.f32 %v2819, %v2930
  %v2948 = vmax.f32 %v2820, %v2929
  %v2949 = vmax.f32 %v2821, %v2927
  %v2950 = vmax.f32 %v2822, %v2925
  %v2951 = vmax.f32 %v2823, %v2923
  %v2952 = vmax.f32 %v2824, %v2921
  %v2953 = vmax.f32 %v2825, %v2919
  %v2954 = vmax.f32 %v2826, %v2917
  %v2955 = vmax.f32 %v2827, %v2915
  %v2956 = vmax.f32 %v2828, %v2913
  %v2957 = vmax.f32 %v2829, %v2911
  %v2958 = vmax.f32 %v2830, %v2909
  %v2959 = vmax.f32 %v2831, %v2907
  %v2960 = vmax.f32 %v2832, %v2905
  %v2961 = vmax.f32 %v2833, %v2903
  %v2962 = vmax.f32 %v2834, %v2901
  %v2963 = vmax.f32 %v2835, %v2931
  %v2964 = vmax.f32 %v2932, %v2934
  %v2965 = vmax.f32 %v2933, %v2935
  %v2966 = vmax.f32 %v2934, %v2936
  %v2967 = vmax.f32 %v2935, %v2937
  %v2968 = vmax.f32 %v2936, %v2938
  %v2969 = vmax.f32 %v2937, %v2939
  %v2970 = vmax.f32 %v2938, %v2940
  %v2971 = vmax.f32 %v2939, %v2941
  %v2972 = vmax.f32 %v2940, %v2942
  %v2973 = vmax.f32 %v2941, %v2943
  %v2974 = vmax.f32 %v2942, %v2944
  %v2975 = vmax.f32 %v2943, %v2945
  %v2976 = vmax.f32 %v2944, %v2946
  %v2977 = vmax.f32 %v2945, %v2947
  %v2978 = vmax.f32 %v2946, %v2932
  %v2979 = vmax.f32 %v2947, %v2933
  %v2980 = vmax.f32 %v2948, %v2950
  %v2981 = vmax.f32 %v2949, %v2951
  %v2982 = vmax.f32 %v2950, %v2952
  %v2983 = vmax.f32 %v2951, %v2953
  %v2984 = vmax.f32 %v2952, %v2954
  %v2985 = vmax.f32 %v2953, %v2955
  %v2986 = vmax.f32 %v2954, %v2956
  %v2987 = vmax.f32 %v2955, %v2957
  %v2988 = vmax.f32 %v2956, %v2958
  %v2989 = vmax.f32 %v2957, %v2959
  %v2990 = vmax.f32 %v2958, %v2960
  %v2991 = vmax.f32 %v2959, %v2961
  %v2992 = vmax.f32 %v2960, %v2962
  %v2993 = vmax.f32 %v2961, %v2963
  %v2994 = vmax.f32 %v2962, %v2948
  %v2995 = vmax.f32 %v2963, %v2949
  %v2996 = vadd.f32 %v2964, %v1246
  %v2997 = vadd.f32 %v2965, %v1246
  %v2998 = vadd.f32 %v2966, %v1246
  %v2999 = vadd.f32 %v2967, %v1246
  %v3000 = vadd.f32 %v2968, %v1246
  %v3001 = vadd.f32 %v2969, %v1246
  %v3002 = vadd.f32 %v2970, %v1246
  %v3003 = vadd.f32 %v2971, %v1246
  %v3004 = vadd.f32 %v2972, %v1246
  %v3005 = vadd.f32 %v2973, %v1246
  %v3006 = vadd.f32 %v2974, %v1246
  %v3007 = vadd.f32 %v2975, %v1246
  %v3008 = vadd.f32 %v2976, %v1246
  %v3009 = vadd.f32 %v2977, %v1246
  %v3010 = vadd.f32 %v2978, %v1246
  %v3011 = vadd.f32 %v2979, %v1246
  %v3012 = vadd.f32 %v2980, %v1251
  %v3013 = vadd.f32 %v2981, %v1251
  %v3014 = vadd.f32 %v2982, %v1251
  %v3015 = vadd.f32 %v2983, %v1251
  %v3016 = vadd.f32 %v2984, %v1251
  %v3017 = vadd.f32 %v2985, %v1251
  %v3018 = vadd.f32 %v2986, %v1251
  %v3019 = vadd.f32 %v2987, %v1251
  %v3020 = vadd.f32 %v2988, %v1251
  %v3021 = vadd.f32 %v2989, %v1251
  %v3022 = vadd.f32 %v2990, %v1251
  %v3023 = vadd.f32 %v2991, %v1251
  %v3024 = vadd.f32 %v2992, %v1251
  %v3025 = vadd.f32 %v2993, %v1251
  %v3026 = vadd.f32 %v2994, %v1251
  %v3027 = vadd.f32 %v2995, %v1251
  %v3028 = vmax.f32 %v2996, %v3012
  %v3029 = vrot.slane %v3028, 4
  %v3030 = vmax.f32 %v3028, %v3029
  %v3031 = vrot.slane %v3030, 2
  %v3032 = vmax.f32 %v3030, %v3031
  %v3033 = vrot.slane %v3032, 1
  %v3034 = vmax.f32 %v3032, %v3033
  %v3035 = vmax.f32 %v2997, %v3013
  %v3036 = vrot.slane %v3035, 4
  %v3037 = vmax.f32 %v3035, %v3036
  %v3038 = vrot.slane %v3037, 2
  %v3039 = vmax.f32 %v3037, %v3038
  %v3040 = vrot.slane %v3039, 1
  %v3041 = vmax.f32 %v3039, %v3040
  %v3042 = vmax.f32 %v2998, %v3014
  %v3043 = vrot.slane %v3042, 4
  %v3044 = vmax.f32 %v3042, %v3043
  %v3045 = vrot.slane %v3044, 2
  %v3046 = vmax.f32 %v3044, %v3045
  %v3047 = vrot.slane %v3046, 1
  %v3048 = vmax.f32 %v3046, %v3047
  %v3049 = vmax.f32 %v2999, %v3015
  %v3050 = vrot.slane %v3049, 4
  %v3051 = vmax.f32 %v3049, %v3050
  %v3052 = vrot.slane %v3051, 2
  %v3053 = vmax.f32 %v3051, %v3052
  %v3054 = vrot.slane %v3053, 1
  %v3055 = vmax.f32 %v3053, %v3054
  %v3056 = vmax.f32 %v3000, %v3016
  %v3057 = vrot.slane %v3056, 4
  %v3058 = vmax.f32 %v3056, %v3057
  %v3059 = vrot.slane %v3058, 2
  %v3060 = vmax.f32 %v3058, %v3059
  %v3061 = vrot.slane %v3060, 1
  %v3062 = vmax.f32 %v3060, %v3061
  %v3063 = vmax.f32 %v3001, %v3017
  %v3064 = vrot.slane %v3063, 4
  %v3065 = vmax.f32 %v3063, %v3064
  %v3066 = vrot.slane %v3065, 2
  %v3067 = vmax.f32 %v3065, %v3066
  %v3068 = vrot.slane %v3067, 1
  %v3069 = vmax.f32 %v3067, %v3068
  %v3070 = vmax.f32 %v3002, %v3018
  %v3071 = vrot.slane %v3070, 4
  %v3072 = vmax.f32 %v3070, %v3071
  %v3073 = vrot.slane %v3072, 2
  %v3074 = vmax.f32 %v3072, %v3073
  %v3075 = vrot.slane %v3074, 1
  %v3076 = vmax.f32 %v3074, %v3075
  %v3077 = vmax.f32 %v3003, %v3019
  %v3078 = vrot.slane %v3077, 4
  %v3079 = vmax.f32 %v3077, %v3078
  %v3080 = vrot.slane %v3079, 2
  %v3081 = vmax.f32 %v3079, %v3080
  %v3082 = vrot.slane %v3081, 1
  %v3083 = vmax.f32 %v3081, %v3082
  %v3084 = vmax.f32 %v3004, %v3020
  %v3085 = vrot.slane %v3084, 4
  %v3086 = vmax.f32 %v3084, %v3085
  %v3087 = vrot.slane %v3086, 2
  %v3088 = vmax.f32 %v3086, %v3087
  %v3089 = vrot.slane %v3088, 1
  %v3090 = vmax.f32 %v3088, %v3089
  %v3091 = vmax.f32 %v3005, %v3021
  %v3092 = vrot.slane %v3091, 4
  %v3093 = vmax.f32 %v3091, %v3092
  %v3094 = vrot.slane %v3093, 2
  %v3095 = vmax.f32 %v3093, %v3094
  %v3096 = vrot.slane %v3095, 1
  %v3097 = vmax.f32 %v3095, %v3096
  %v3098 = vmax.f32 %v3006, %v3022
  %v3099 = vrot.slane %v3098, 4
  %v3100 = vmax.f32 %v3098, %v3099
  %v3101 = vrot.slane %v3100, 2
  %v3102 = vmax.f32 %v3100, %v3101
  %v3103 = vrot.slane %v3102, 1
  %v3104 = vmax.f32 %v3102, %v3103
  %v3105 = vmax.f32 %v3007, %v3023
  %v3106 = vrot.slane %v3105, 4
  %v3107 = vmax.f32 %v3105, %v3106
  %v3108 = vrot.slane %v3107, 2
  %v3109 = vmax.f32 %v3107, %v3108
  %v3110 = vrot.slane %v3109, 1
  %v3111 = vmax.f32 %v3109, %v3110
  %v3112 = vmax.f32 %v3008, %v3024
  %v3113 = vrot.slane %v3112, 4
  %v3114 = vmax.f32 %v3112, %v3113
  %v3115 = vrot.slane %v3114, 2
  %v3116 = vmax.f32 %v3114, %v3115
  %v3117 = vrot.slane %v3116, 1
  %v3118 = vmax.f32 %v3116, %v3117
  %v3119 = vmax.f32 %v3009, %v3025
  %v3120 = vrot.slane %v3119, 4
  %v3121 = vmax.f32 %v3119, %v3120
  %v3122 = vrot.slane %v3121, 2
  %v3123 = vmax.f32 %v3121, %v3122
  %v3124 = vrot.slane %v3123, 1
  %v3125 = vmax.f32 %v3123, %v3124
  %v3126 = vmax.f32 %v3010, %v3026
  %v3127 = vrot.slane %v3126, 4
  %v3128 = vmax.f32 %v3126, %v3127
  %v3129 = vrot.slane %v3128, 2
  %v3130 = vmax.f32 %v3128, %v3129
  %v3131 = vrot.slane %v3130, 1
  %v3132 = vmax.f32 %v3130, %v3131
  %v3133 = vmax.f32 %v3011, %v3027
  %v3134 = vrot.slane %v3133, 4
  %v3135 = vmax.f32 %v3133, %v3134
  %v3136 = vrot.slane %v3135, 2
  %v3137 = vmax.f32 %v3135, %v3136
  %v3138 = vrot.slane %v3137, 1
  %v3139 = vmax.f32 %v3137, %v3138
  %v3140 = vsub.f32 %v2996, %v3034
  %v3141 = vsub.f32 %v2997, %v3041
  %v3142 = vsub.f32 %v2998, %v3048
  %v3143 = vsub.f32 %v2999, %v3055
  %v3144 = vsub.f32 %v3000, %v3062
  %v3145 = vsub.f32 %v3001, %v3069
  %v3146 = vsub.f32 %v3002, %v3076
  %v3147 = vsub.f32 %v3003, %v3083
  %v3148 = vsub.f32 %v3004, %v3090
  %v3149 = vsub.f32 %v3005, %v3097
  %v3150 = vsub.f32 %v3006, %v3104
  %v3151 = vsub.f32 %v3007, %v3111
  %v3152 = vsub.f32 %v3008, %v3118
  %v3153 = vsub.f32 %v3009, %v3125
  %v3154 = vsub.f32 %v3010, %v3132
  %v3155 = vsub.f32 %v3011, %v3139
  %v3156 = vsub.f32 %v3012, %v3034
  %v3157 = vsub.f32 %v3013, %v3041
  %v3158 = vsub.f32 %v3014, %v3048
  %v3159 = vsub.f32 %v3015, %v3055
  %v3160 = vsub.f32 %v3016, %v3062
  %v3161 = vsub.f32 %v3017, %v3069
  %v3162 = vsub.f32 %v3018, %v3076
  %v3163 = vsub.f32 %v3019, %v3083
  %v3164 = vsub.f32 %v3020, %v3090
  %v3165 = vsub.f32 %v3021, %v3097
  %v3166 = vsub.f32 %v3022, %v3104
  %v3167 = vsub.f32 %v3023, %v3111
  %v3168 = vsub.f32 %v3024, %v3118
  %v3169 = vsub.f32 %v3025, %v3125
  %v3170 = vsub.f32 %v3026, %v3132
  %v3171 = vsub.f32 %v3027, %v3139
  %v3172 = vmul.f32 %v3140, 1.442695
  %v3173 = vpow.pop %v3172
  %v3174 = vmul.f32 %v3141, 1.442695
  %v3175 = vpow.pop %v3174
  %v3176 = vmul.f32 %v3142, 1.442695
  %v3177 = vpow.pop %v3176
  %v3178 = vmul.f32 %v3143, 1.442695
  %v3179 = vpow.pop %v3178
  %v3180 = vmul.f32 %v3144, 1.442695
  %v3181 = vpow.pop %v3180
  %v3182 = vmul.f32 %v3145, 1.442695
  %v3183 = vpow.pop %v3182
  %v3184 = vmul.f32 %v3146, 1.442695
  %v3185 = vpow.pop %v3184
  %v3186 = vmul.f32 %v3147, 1.442695
  %v3187 = vpow.pop %v3186
  %v3188 = vmul.f32 %v3148, 1.442695
  %v3189 = vpow.pop %v3188
  %v3190 = vmul.f32 %v3149, 1.442695
  %v3191 = vpow.pop %v3190
  %v3192 = vmul.f32 %v3150, 1.442695
  %v3193 = vpow.pop %v3192
  %v3194 = vmul.f32 %v3151, 1.442695
  %v3195 = vpow.pop %v3194
  %v3196 = vmul.f32 %v3152, 1.442695
  %v3197 = vpow.pop %v3196
  %v3198 = vmul.f32 %v3153, 1.442695
  %v3199 = vpow.pop %v3198
  %v3200 = vmul.f32 %v3154, 1.442695
  %v3201 = vpow.pop %v3200
  %v3202 = vmul.f32 %v3155, 1.442695
  %v3203 = vpow.pop %v3202
  %v3204 = vmul.f32 %v3156, 1.442695
  %v3205 = vpow.pop %v3204
  %v3206 = vmul.f32 %v3157, 1.442695
  %v3207 = vpow.pop %v3206
  %v3208 = vmul.f32 %v3158, 1.442695
  %v3209 = vpow.pop %v3208
  %v3210 = vmul.f32 %v3159, 1.442695
  %v3211 = vpow.pop %v3210
  %v3212 = vmul.f32 %v3160, 1.442695
  %v3213 = vpow.pop %v3212
  %v3214 = vmul.f32 %v3161, 1.442695
  %v3215 = vpow.pop %v3214
  %v3216 = vmul.f32 %v3162, 1.442695
  %v3217 = vpow.pop %v3216
  %v3218 = vmul.f32 %v3163, 1.442695
  %v3219 = vpow.pop %v3218
  %v3220 = vmul.f32 %v3164, 1.442695
  %v3221 = vpow.pop %v3220
  %v3222 = vmul.f32 %v3165, 1.442695
  %v3223 = vpow.pop %v3222
  %v3224 = vmul.f32 %v3166, 1.442695
  %v3225 = vpow.pop %v3224
  %v3226 = vmul.f32 %v3167, 1.442695
  %v3227 = vpow.pop %v3226
  %v3228 = vmul.f32 %v3168, 1.442695
  %v3229 = vpow.pop %v3228
  %v3230 = vmul.f32 %v3169, 1.442695
  %v3231 = vpow.pop %v3230
  %v3232 = vmul.f32 %v3170, 1.442695
  %v3233 = vpow.pop %v3232
  %v3234 = vmul.f32 %v3171, 1.442695
  %v3235 = vpow.pop %v3234
  %v3236 = vadd.f32 %v3173, %v3205
  %v3237 = vrot.slane %v3236, 4
  %v3238 = vadd.f32 %v3236, %v3237
  %v3239 = vrot.slane %v3238, 2
  %v3240 = vadd.f32 %v3238, %v3239
  %v3241 = vrot.slane %v3240, 1
  %v3242 = vadd.f32 %v3240, %v3241
  %v3243 = vadd.f32 %v3175, %v3207
  %v3244 = vrot.slane %v3243, 4
  %v3245 = vadd.f32 %v3243, %v3244
  %v3246 = vrot.slane %v3245, 2
  %v3247 = vadd.f32 %v3245, %v3246
  %v3248 = vrot.slane %v3247, 1
  %v3249 = vadd.f32 %v3247, %v3248
  %v3250 = vadd.f32 %v3177, %v3209
  %v3251 = vrot.slane %v3250, 4
  %v3252 = vadd.f32 %v3250, %v3251
  %v3253 = vrot.slane %v3252, 2
  %v3254 = vadd.f32 %v3252, %v3253
  %v3255 = vrot.slane %v3254, 1
  %v3256 = vadd.f32 %v3254, %v3255
  %v3257 = vadd.f32 %v3179, %v3211
  %v3258 = vrot.slane %v3257, 4
  %v3259 = vadd.f32 %v3257, %v3258
  %v3260 = vrot.slane %v3259, 2
  %v3261 = vadd.f32 %v3259, %v3260
  %v3262 = vrot.slane %v3261, 1
  %v3263 = vadd.f32 %v3261, %v3262
  %v3264 = vadd.f32 %v3181, %v3213
  %v3265 = vrot.slane %v3264, 4
  %v3266 = vadd.f32 %v3264, %v3265
  %v3267 = vrot.slane %v3266, 2
  %v3268 = vadd.f32 %v3266, %v3267
  %v3269 = vrot.slane %v3268, 1
  %v3270 = vadd.f32 %v3268, %v3269
  %v3271 = vadd.f32 %v3183, %v3215
  %v3272 = vrot.slane %v3271, 4
  %v3273 = vadd.f32 %v3271, %v3272
  %v3274 = vrot.slane %v3273, 2
  %v3275 = vadd.f32 %v3273, %v3274
  %v3276 = vrot.slane %v3275, 1
  %v3277 = vadd.f32 %v3275, %v3276
  %v3278 = vadd.f32 %v3185, %v3217
  %v3279 = vrot.slane %v3278, 4
  %v3280 = vadd.f32 %v3278, %v3279
  %v3281 = vrot.slane %v3280, 2
  %v3282 = vadd.f32 %v3280, %v3281
  %v3283 = vrot.slane %v3282, 1
  %v3284 = vadd.f32 %v3282, %v3283
  %v3285 = vadd.f32 %v3187, %v3219
  %v3286 = vrot.slane %v3285, 4
  %v3287 = vadd.f32 %v3285, %v3286
  %v3288 = vrot.slane %v3287, 2
  %v3289 = vadd.f32 %v3287, %v3288
  %v3290 = vrot.slane %v3289, 1
  %v3291 = vadd.f32 %v3289, %v3290
  %v3292 = vadd.f32 %v3189, %v3221
  %v3293 = vrot.slane %v3292, 4
  %v3294 = vadd.f32 %v3292, %v3293
  %v3295 = vrot.slane %v3294, 2
  %v3296 = vadd.f32 %v3294, %v3295
  %v3297 = vrot.slane %v3296, 1
  %v3298 = vadd.f32 %v3296, %v3297
  %v3299 = vadd.f32 %v3191, %v3223
  %v3300 = vrot.slane %v3299, 4
  %v3301 = vadd.f32 %v3299, %v3300
  %v3302 = vrot.slane %v3301, 2
  %v3303 = vadd.f32 %v3301, %v3302
  %v3304 = vrot.slane %v3303, 1
  %v3305 = vadd.f32 %v3303, %v3304
  %v3306 = vadd.f32 %v3193, %v3225
  %v3307 = vrot.slane %v3306, 4
  %v3308 = vadd.f32 %v3306, %v3307
  %v3309 = vrot.slane %v3308, 2
  %v3310 = vadd.f32 %v3308, %v3309
  %v3311 = vrot.slane %v3310, 1
  %v3312 = vadd.f32 %v3310, %v3311
  %v3313 = vadd.f32 %v3195, %v3227
  %v3314 = vrot.slane %v3313, 4
  %v3315 = vadd.f32 %v3313, %v3314
  %v3316 = vrot.slane %v3315, 2
  %v3317 = vadd.f32 %v3315, %v3316
  %v3318 = vrot.slane %v3317, 1
  %v3319 = vadd.f32 %v3317, %v3318
  %v3320 = vadd.f32 %v3197, %v3229
  %v3321 = vrot.slane %v3320, 4
  %v3322 = vadd.f32 %v3320, %v3321
  %v3323 = vrot.slane %v3322, 2
  %v3324 = vadd.f32 %v3322, %v3323
  %v3325 = vrot.slane %v3324, 1
  %v3326 = vadd.f32 %v3324, %v3325
  %v3327 = vadd.f32 %v3199, %v3231
  %v3328 = vrot.slane %v3327, 4
  %v3329 = vadd.f32 %v3327, %v3328
  %v3330 = vrot.slane %v3329, 2
  %v3331 = vadd.f32 %v3329, %v3330
  %v3332 = vrot.slane %v3331, 1
  %v3333 = vadd.f32 %v3331, %v3332
  %v3334 = vadd.f32 %v3201, %v3233
  %v3335 = vrot.slane %v3334, 4
  %v3336 = vadd.f32 %v3334, %v3335
  %v3337 = vrot.slane %v3336, 2
  %v3338 = vadd.f32 %v3336, %v3337
  %v3339 = vrot.slane %v3338, 1
  %v3340 = vadd.f32 %v3338, %v3339
  %v3341 = vadd.f32 %v3203, %v3235
  %v3342 = vrot.slane %v3341, 4
  %v3343 = vadd.f32 %v3341, %v3342
  %v3344 = vrot.slane %v3343, 2
  %v3345 = vadd.f32 %v3343, %v3344
  %v3346 = vrot.slane %v3345, 1
  %v3347 = vadd.f32 %v3345, %v3346
  %v3348 = vlog2.pop %v3242
  %v3349 = vmul.f32 %v3348, 0.6931472
  %v3350 = vlog2.pop %v3249
  %v3351 = vmul.f32 %v3350, 0.6931472
  %v3352 = vlog2.pop %v3256
  %v3353 = vmul.f32 %v3352, 0.6931472
  %v3354 = vlog2.pop %v3263
  %v3355 = vmul.f32 %v3354, 0.6931472
  %v3356 = vlog2.pop %v3270
  %v3357 = vmul.f32 %v3356, 0.6931472
  %v3358 = vlog2.pop %v3277
  %v3359 = vmul.f32 %v3358, 0.6931472
  %v3360 = vlog2.pop %v3284
  %v3361 = vmul.f32 %v3360, 0.6931472
  %v3362 = vlog2.pop %v3291
  %v3363 = vmul.f32 %v3362, 0.6931472
  %v3364 = vlog2.pop %v3298
  %v3365 = vmul.f32 %v3364, 0.6931472
  %v3366 = vlog2.pop %v3305
  %v3367 = vmul.f32 %v3366, 0.6931472
  %v3368 = vlog2.pop %v3312
  %v3369 = vmul.f32 %v3368, 0.6931472
  %v3370 = vlog2.pop %v3319
  %v3371 = vmul.f32 %v3370, 0.6931472
  %v3372 = vlog2.pop %v3326
  %v3373 = vmul.f32 %v3372, 0.6931472
  %v3374 = vlog2.pop %v3333
  %v3375 = vmul.f32 %v3374, 0.6931472
  %v3376 = vlog2.pop %v3340
  %v3377 = vmul.f32 %v3376, 0.6931472
  %v3378 = vlog2.pop %v3347
  %v3379 = vmul.f32 %v3378, 0.6931472
  %v3380 = vadd.f32 %v3034, %v3349
  %v3381 = vadd.f32 %v3041, %v3351
  %v3382 = vadd.f32 %v3048, %v3353
  %v3383 = vadd.f32 %v3055, %v3355
  %v3384 = vadd.f32 %v3062, %v3357
  %v3385 = vadd.f32 %v3069, %v3359
  %v3386 = vadd.f32 %v3076, %v3361
  %v3387 = vadd.f32 %v3083, %v3363
  %v3388 = vadd.f32 %v3090, %v3365
  %v3389 = vadd.f32 %v3097, %v3367
  %v3390 = vadd.f32 %v3104, %v3369
  %v3391 = vadd.f32 %v3111, %v3371
  %v3392 = vadd.f32 %v3118, %v3373
  %v3393 = vadd.f32 %v3125, %v3375
  %v3394 = vadd.f32 %v3132, %v3377
  %v3395 = vadd.f32 %v3139, %v3379
  %v3396 = vmax.f32 %v3380, 0.0
  %v3397 = vmax.f32 %v3381, 0.0
  %v3398 = vmax.f32 %v3382, 0.0
  %v3399 = vmax.f32 %v3383, 0.0
  %v3400 = vmax.f32 %v3384, 0.0
  %v3401 = vmax.f32 %v3385, 0.0
  %v3402 = vmax.f32 %v3386, 0.0
  %v3403 = vmax.f32 %v3387, 0.0
  %v3404 = vmax.f32 %v3388, 0.0
  %v3405 = vmax.f32 %v3389, 0.0
  %v3406 = vmax.f32 %v3390, 0.0
  %v3407 = vmax.f32 %v3391, 0.0
  %v3408 = vmax.f32 %v3392, 0.0
  %v3409 = vmax.f32 %v3393, 0.0
  %v3410 = vmax.f32 %v3394, 0.0
  %v3411 = vmax.f32 %v3395, 0.0
  %v3428 = vcombine.low %v3396, %v3397
  %v3429 = vcombine.low %v3398, %v3399
  %v3430 = vcombine.low %v3400, %v3401
  %v3431 = vcombine.low %v3402, %v3403
  %v3433 = vunpack.c.l.s4 1966171168
  %v3434 = vunpack.c.0.s8 %v3433
  %v3435 = vlaneseq
  %v3436 = vshrl.u32 %v3435, 7
  %v3437 = vsub.s32 %v3434, %v3436
  %v3438 = vrot.slane %v3428, %v3437
  %v3440 = vunpack.c.l.s4 1966171168
  %v3441 = vunpack.c.0.s8 %v3440
  %v3442 = vlaneseq
  %v3443 = vshrl.u32 %v3442, 7
  %v3444 = vsub.s32 %v3441, %v3443
  %v3445 = vrot.slane %v3429, %v3444
  %v3447 = vunpack.c.l.s4 1966171168
  %v3448 = vunpack.c.0.s8 %v3447
  %v3449 = vlaneseq
  %v3450 = vshrl.u32 %v3449, 7
  %v3451 = vsub.s32 %v3448, %v3450
  %v3452 = vrot.slane %v3430, %v3451
  %v3454 = vunpack.c.l.s4 1966171168
  %v3455 = vunpack.c.0.s8 %v3454
  %v3456 = vlaneseq
  %v3457 = vshrl.u32 %v3456, 7
  %v3458 = vsub.s32 %v3455, %v3457
  %v3459 = vrot.slane %v3431, %v3458
  %v3460 = vcombine.low %v3438, %v3445
  %v3461 = vcombine.low %v3452, %v3459
  %v3463 = vunpack.c.l.s4 1966171168
  %v3464 = vunpack.c.0.s8 %v3463
  %v3465 = vlaneseq
  %v3466 = vshrl.u32 %v3465, 7
  %v3467 = vsub.s32 %v3464, %v3466
  %v3468 = vrot.slane %v3460, %v3467
  %v3470 = vunpack.c.l.s4 1966171168
  %v3471 = vunpack.c.0.s8 %v3470
  %v3472 = vlaneseq
  %v3473 = vshrl.u32 %v3472, 7
  %v3474 = vsub.s32 %v3471, %v3473
  %v3475 = vrot.slane %v3461, %v3474
  %v3476 = vcombine.low %v3468, %v3475
  %v3477 = vcombine.low %v3404, %v3405
  %v3478 = vcombine.low %v3406, %v3407
  %v3479 = vcombine.low %v3408, %v3409
  %v3480 = vcombine.low %v3410, %v3411
  %v3482 = vunpack.c.l.s4 1966171168
  %v3483 = vunpack.c.0.s8 %v3482
  %v3484 = vlaneseq
  %v3485 = vshrl.u32 %v3484, 7
  %v3486 = vsub.s32 %v3483, %v3485
  %v3487 = vrot.slane %v3477, %v3486
  %v3489 = vunpack.c.l.s4 1966171168
  %v3490 = vunpack.c.0.s8 %v3489
  %v3491 = vlaneseq
  %v3492 = vshrl.u32 %v3491, 7
  %v3493 = vsub.s32 %v3490, %v3492
  %v3494 = vrot.slane %v3478, %v3493
  %v3496 = vunpack.c.l.s4 1966171168
  %v3497 = vunpack.c.0.s8 %v3496
  %v3498 = vlaneseq
  %v3499 = vshrl.u32 %v3498, 7
  %v3500 = vsub.s32 %v3497, %v3499
  %v3501 = vrot.slane %v3479, %v3500
  %v3503 = vunpack.c.l.s4 1966171168
  %v3504 = vunpack.c.0.s8 %v3503
  %v3505 = vlaneseq
  %v3506 = vshrl.u32 %v3505, 7
  %v3507 = vsub.s32 %v3504, %v3506
  %v3508 = vrot.slane %v3480, %v3507
  %v3509 = vcombine.low %v3487, %v3494
  %v3510 = vcombine.low %v3501, %v3508
  %v3512 = vunpack.c.l.s4 1966171168
  %v3513 = vunpack.c.0.s8 %v3512
  %v3514 = vlaneseq
  %v3515 = vshrl.u32 %v3514, 7
  %v3516 = vsub.s32 %v3513, %v3515
  %v3517 = vrot.slane %v3509, %v3516
  %v3519 = vunpack.c.l.s4 1966171168
  %v3520 = vunpack.c.0.s8 %v3519
  %v3521 = vlaneseq
  %v3522 = vshrl.u32 %v3521, 7
  %v3523 = vsub.s32 %v3520, %v3522
  %v3524 = vrot.slane %v3510, %v3523
  %v3525 = vcombine.low %v3517, %v3524
  %s3528 = scalar_lea.vmem %s3, 16
  %3529 = vst [vmem:[%s3528] sm:$0xff] %v3476
  %3530 = vst [vmem:[%s3528 + $0x8] sm:$0xff] %v3525
  // Predicated region
  $region14: #{model_forward.1} parent=0 // pred_check
    _
  $region15: #{model_forward.1} parent=0 // pred_check_branch
    %3532 = sbr.rel (0) target = $region17
  $region16: #{model_forward.1} parent=0 // pred_region
    _
  $region17: #{model_forward.1} parent=0 // pred_fallthru
    _
  // Predicated region
  $region18: #{model_forward.1} parent=0 // pred_check
    _
  $region19: #{model_forward.1} parent=0 // pred_check_branch
    %3534 = sbr.rel (0) target = $region21
  $region20: #{model_forward.1} parent=0 // pred_region
    _
  $region21: #{model_forward.1} parent=0 // pred_fallthru
    _

</llo_original>
